<compile_context>
chip_gen: v5e
topology: v5e:2x2
jax: 0.10.0
libtpu: 0.0.40
codegen_flags: <defaults>
</compile_context>

<pallas_src>
import functools
import math

import jax
import jax.numpy as jnp
from jax import lax
from jax.experimental import pallas as pl
from jax.experimental.pallas import tpu as pltpu

BN_EPS = 1e-5
LANE = 128


def _round_up(x, m):
    return (x + m - 1) // m * m


def _vmem_capacity_bytes():
    try:
        info = pltpu.get_tpu_info()
        for attr in ("vmem_capacity_bytes", "vmem_size_bytes", "vmem_bytes"):
            v = getattr(info, attr, None)
            if v:
                return int(v)
    except Exception:
        pass
    return 64 * 1024 * 1024  # conservative default (v7x per-TC VMEM)


def _pick_vmem_limit():
    cap = _vmem_capacity_bytes()
    # v5e/v6e (128 MiB physical) -> 96 MiB scoped; v7x (64 MiB) -> 48 MiB.
    return max(32 * 1024 * 1024, min(cap * 3 // 4, 96 * 1024 * 1024))


def _select_row_tile(n_rows, vmem_limit, requested=None):
    n8 = _round_up(max(n_rows, 8), 8)
    if requested is not None:
        return max(8, min(_round_up(requested, 8), n8))
    # ~4 KiB VMEM per activation row (explicit scratch + live f32 intermediates),
    # ~1 MiB fixed for the weight/BN blocks; keep ~40% headroom.
    budget = int(vmem_limit * 0.6) - (1 << 20)
    tile = max(512, budget // 4096)
    tile = min(tile, 8192)
    tile = (tile // 8) * 8
    return min(tile, n8)


# -----------------------------------------------------------------------------
# Kernel
# -----------------------------------------------------------------------------
def _mlp_kernel(*refs, tile, n_tiles, n_valid, n_pad, has_final):
    it = iter(refs)
    _x_alias = next(it)            # aliased view of the activation carrier (unused)
    w1_ref = next(it)              # (wp, wp) bf16, layer d, (in, out)
    w2_ref = next(it)              # (wp, wp) bf16, layer d
    bn_ref = next(it)              # (4, wp) f32: [gamma1, beta1, gamma2, beta2]
    wf_ref = next(it) if has_final else None
    bf_ref = next(it) if has_final else None
    act_hbm = next(it)             # (n_pad, wp) bf16 HBM activation carrier (== input 0)
    y_hbm = next(it)               # (n_pad, outp) f32 final output (HBM)
    act_buf = next(it)             # (2, tile, wp) bf16 double-buffered activation tile
    stage_ref = next(it)           # (tile, wp) bf16 activation writeback staging
    y_stage_ref = next(it)         # (tile, outp) f32 output staging
    stat_ref = next(it)            # (2, wp) f32 per-feature [sum, sumsq]
    aff_ref = next(it)             # (4, wp) f32 [scale1, shift1, scale2, shift2]
    in_sems = next(it)             # DMA sems, one per input slot
    cp_sem = next(it)              # DMA sem for in-step (waited) writebacks

    d = pl.program_id(0)           # residual layer
    p = pl.program_id(1)           # 0: bn1 stats, 1: bn2 stats, 2: finalize layer
    r = pl.program_id(2)           # row tile
    nd = pl.num_programs(0)

    step = (d * 3 + p) * n_tiles + r
    cur = lax.rem(step, 2)
    nxt = 1 - cur
    row0 = pl.multiple_of(r * tile, tile)
    r_next = lax.rem(r + 1, n_tiles)
    row0_next = pl.multiple_of(r_next * tile, tile)

    is_first = (d == 0) & (p == 0) & (r == 0)
    is_last_step = (d == nd - 1) & (p == 2) & (r == n_tiles - 1)

    def in_copy(slot, start):
        return pltpu.make_async_copy(
            act_hbm.at[pl.ds(start, tile), :], act_buf.at[slot], in_sems.at[slot])

    # Prime the double buffer on the very first grid step.
    @pl.when(is_first)
    def _():
        in_copy(cur, row0).start()

    in_copy(cur, row0).wait()

    # Phases 0/1 never write the activation -> safe to prefetch the next tile early.
    @pl.when(p < 2)
    def _():
        in_copy(nxt, row0_next).start()

    x_bf = act_buf[cur]            # (tile, wp) bf16
    w1 = w1_ref[...]
    w2 = w2_ref[...]

    inv_n = 1.0 / float(n_valid)
    needs_mask = n_pad != n_valid

    def accum_stats(h):
        if needs_mask:
            rows = row0 + lax.broadcasted_iota(jnp.int32, (tile, 1), 0)
            hm = h * (rows < n_valid).astype(jnp.float32)
        else:
            hm = h
        stat_ref[0:1, :] += jnp.sum(hm, axis=0, keepdims=True)
        stat_ref[1:2, :] += jnp.sum(hm * h, axis=0, keepdims=True)

    def finalize_bn(idx):
        g = bn_ref[idx:idx + 1, :]
        b = bn_ref[idx + 1:idx + 2, :]
        mean = stat_ref[0:1, :] * inv_n
        var = jnp.maximum(stat_ref[1:2, :] * inv_n - mean * mean, 0.0)
        scale = g * lax.rsqrt(var + BN_EPS)      # rsqrt -> EUP slot
        aff_ref[idx:idx + 1, :] = scale
        aff_ref[idx + 1:idx + 2, :] = b - mean * scale

    @pl.when((p == 0) & (r == 0))
    def _():
        stat_ref[...] = jnp.zeros_like(stat_ref)

    @pl.when((p == 1) & (r == 0))
    def _():
        finalize_bn(0)                           # BN1 from phase-0 stats
        stat_ref[...] = jnp.zeros_like(stat_ref)

    @pl.when((p == 2) & (r == 0))
    def _():
        finalize_bn(2)                           # BN2 from phase-1 stats

    def fc1():
        return jnp.dot(x_bf, w1, preferred_element_type=jnp.float32)

    def bn1_relu(h1):
        return jnp.maximum(h1 * aff_ref[0:1, :] + aff_ref[1:2, :], 0.0)

    @pl.when(p == 0)
    def _():
        accum_stats(fc1())

    @pl.when(p == 1)
    def _():
        a1 = bn1_relu(fc1())
        h2 = jnp.dot(a1.astype(jnp.bfloat16), w2, preferred_element_type=jnp.float32)
        accum_stats(h2)

    @pl.when(p == 2)
    def _():
        a1 = bn1_relu(fc1())
        h2 = jnp.dot(a1.astype(jnp.bfloat16), w2, preferred_element_type=jnp.float32)
        x_f = x_bf.astype(jnp.float32)
        x_new = jnp.maximum(h2 * aff_ref[2:3, :] + aff_ref[3:4, :] + x_f, 0.0)

        @pl.when(d < nd - 1)                     # next layer's input
        def _():
            stage_ref[...] = x_new.astype(stage_ref.dtype)
            cp = pltpu.make_async_copy(stage_ref,
                                       act_hbm.at[pl.ds(row0, tile), :], cp_sem)
            cp.start()
            cp.wait()

        @pl.when(d == nd - 1)                    # final Linear fused on last layer
        def _():
            if has_final:
                y = (jnp.dot(x_new.astype(jnp.bfloat16), wf_ref[...],
                             preferred_element_type=jnp.float32) + bf_ref[...])
            else:
                y = x_new
            y_stage_ref[...] = y.astype(y_stage_ref.dtype)
            cp = pltpu.make_async_copy(y_stage_ref,
                                       y_hbm.at[pl.ds(row0, tile), :], cp_sem)
            cp.start()
            cp.wait()

    # In phase 2, prefetch only after the (waited) writeback so the n_tiles == 1
    # case never races the in-flight activation write.
    @pl.when((p == 2) & jnp.logical_not(is_last_step))
    def _():
        in_copy(nxt, row0_next).start()


# -----------------------------------------------------------------------------
# Parameter construction (mirrors the PyTorch init; fc biases absorbed by BN)
# -----------------------------------------------------------------------------
def init_linear_default(key, in_f, out_f):
    bound = 1.0 / math.sqrt(in_f)
    return jax.random.uniform(key, (out_f, in_f), jnp.float32, -bound, bound)


def init_linear_custom(key, in_f, out_f):
    fan_avg = 0.5 * (in_f + out_f)
    std = math.sqrt(1.0 / fan_avg / 10.0)
    w = std * jax.random.truncated_normal(key, -2.0, 2.0, (out_f, in_f), jnp.float32)
    return w, jnp.zeros((out_f,), jnp.float32)


def build_mlp_params(key, width, depth, output_dims):
    wp = _round_up(width, LANE)
    keys = jax.random.split(key, depth + 1)
    pad2 = ((0, wp - width), (0, wp - width))
    w1_list, w2_list = [], []
    for d in range(depth):
        k1, k2 = jax.random.split(keys[d])
        w1_list.append(jnp.pad(init_linear_default(k1, width, width).T, pad2))
        w2_list.append(jnp.pad(init_linear_default(k2, width, width).T, pad2))
    w1s = jnp.stack(w1_list).astype(jnp.bfloat16)          # (depth, wp, wp) (in, out)
    w2s = jnp.stack(w2_list).astype(jnp.bfloat16)
    ones = jnp.ones((depth, 1, wp), jnp.float32)
    zeros = jnp.zeros((depth, 1, wp), jnp.float32)
    bns = jnp.concatenate([ones, zeros, ones, zeros], axis=1)   # (depth, 4, wp)

    final = None
    if output_dims is not None:
        outp = _round_up(output_dims, LANE)
        wf, bf = init_linear_custom(keys[depth], width, output_dims)
        wf_t = jnp.pad(wf.T, ((0, wp - width), (0, outp - output_dims)))
        bf_p = jnp.pad(bf, (0, outp - output_dims)).reshape(1, outp)
        final = (wf_t.astype(jnp.bfloat16), bf_p)
    return {"res": (w1s, w2s, bns), "final": final}


# -----------------------------------------------------------------------------
# Forward wrapper
# -----------------------------------------------------------------------------
def mlp_forward(data, params, *, output_dims=None, row_tile=None):
    batch, num_pixels, features = data.shape
    w1s, w2s, bns = params["res"]
    depth, wp = w1s.shape[0], w1s.shape[1]
    has_final = params["final"] is not None
    outp = params["final"][0].shape[1] if has_final else wp
    out_cols = output_dims if has_final else features

    x = data.reshape(-1, features).astype(jnp.bfloat16)
    n = x.shape[0]

    vmem_limit = _pick_vmem_limit()
    tile = _select_row_tile(n, vmem_limit, row_tile)
    n_tiles = pl.cdiv(n, tile)
    n_pad = n_tiles * tile
    x = jnp.pad(x, ((0, n_pad - n), (0, wp - features)))    # activation carrier seed

    kernel = functools.partial(_mlp_kernel, tile=tile, n_tiles=n_tiles,
                               n_valid=n, n_pad=n_pad, has_final=has_final)

    in_specs = [
        pl.BlockSpec(memory_space=pl.ANY),                                  # act carrier
        pl.BlockSpec((pl.Squeezed(), wp, wp), lambda d, p, r: (d, 0, 0)),   # W1[d]
        pl.BlockSpec((pl.Squeezed(), wp, wp), lambda d, p, r: (d, 0, 0)),   # W2[d]
        pl.BlockSpec((pl.Squeezed(), 4, wp), lambda d, p, r: (d, 0, 0)),    # BN params[d]
    ]
    args = [x, w1s, w2s, bns]
    if has_final:
        wf, bf = params["final"]
        in_specs += [pl.BlockSpec((wp, outp), lambda d, p, r: (0, 0)),      # resident
                     pl.BlockSpec((1, outp), lambda d, p, r: (0, 0))]
        args += [wf, bf]

    scratch_shapes = [
        pltpu.VMEM((2, tile, wp), jnp.bfloat16),   # double-buffered activation tile
        pltpu.VMEM((tile, wp), jnp.bfloat16),      # activation writeback staging
        pltpu.VMEM((tile, outp), jnp.float32),     # output staging
        pltpu.VMEM((2, wp), jnp.float32),          # per-feature sum / sumsq
        pltpu.VMEM((4, wp), jnp.float32),          # BN scale/shift for the layer
        pltpu.SemaphoreType.DMA((2,)),             # in-DMA sems (one per slot)
        pltpu.SemaphoreType.DMA(()),               # waited writeback sem
    ]

    out_shape = (jax.ShapeDtypeStruct((n_pad, wp), jnp.bfloat16),    # act (aliased to x)
                 jax.ShapeDtypeStruct((n_pad, outp), jnp.float32))   # final output
    out_specs = (pl.BlockSpec(memory_space=pl.ANY),
                 pl.BlockSpec(memory_space=pl.ANY))

    _, y = pl.pallas_call(
        kernel,
        out_shape=out_shape,
        grid_spec=pltpu.PrefetchScalarGridSpec(
            num_scalar_prefetch=0,
            grid=(depth, 3, n_tiles),
            in_specs=in_specs,
            out_specs=out_specs,
            scratch_shapes=scratch_shapes,
        ),
        input_output_aliases={0: 0},
        compiler_params=pltpu.CompilerParams(
            # Exact full-batch BN makes every axis a sequential dependency.
            dimension_semantics=("arbitrary", "arbitrary", "arbitrary"),
            vmem_limit_bytes=vmem_limit,
        ),
    )(*args)

    return y[:n, :out_cols].reshape(batch, num_pixels, out_cols)


# -----------------------------------------------------------------------------
# Pure-JAX f32 reference (same math: training-mode BN, biased var, fused bias)
# -----------------------------------------------------------------------------
def mlp_reference(data, params, *, output_dims=None):
    batch, num_pixels, features = data.shape
    w1s, w2s, bns = params["res"]
    depth, wp = w1s.shape[0], w1s.shape[1]
    x = data.reshape(-1, features).astype(jnp.float32)
    x = jnp.pad(x, ((0, 0), (0, wp - features)))

    def bn(h, g, b):
        mean = jnp.mean(h, axis=0, keepdims=True)
        var = jnp.mean(jnp.square(h - mean), axis=0, keepdims=True)
        return (h - mean) / jnp.sqrt(var + BN_EPS) * g + b

    for d in range(depth):
        h = x @ w1s[d].astype(jnp.float32)
        h = jnp.maximum(bn(h, bns[d, 0:1, :], bns[d, 1:2, :]), 0.0)
        h = h @ w2s[d].astype(jnp.float32)
        h = bn(h, bns[d, 2:3, :], bns[d, 3:4, :])
        x = jnp.maximum(h + x, 0.0)
    if params["final"] is not None:
        wf, bf = params["final"]
        y = x @ wf.astype(jnp.float32) + bf
        out_cols = output_dims
    else:
        y, out_cols = x, features
    return y[:, :out_cols].reshape(batch, num_pixels, out_cols)


if __name__ == "__main__":
    WIDTH, DEPTH, OUTPUT_DIMS = 32, 2, 16
    BATCH, NUM_PIXELS = 2, 9     # 18 rows -> 3 row tiles of 8 (last tile masked)

    key = jax.random.PRNGKey(0)
    k_data, k_params = jax.random.split(key)
    data = jax.random.normal(k_data, (BATCH, NUM_PIXELS, WIDTH), jnp.float32)
    params = build_mlp_params(k_params, WIDTH, DEPTH, OUTPUT_DIMS)

    fwd = jax.jit(functools.partial(mlp_forward, output_dims=OUTPUT_DIMS, row_tile=8))
    out = fwd(data, params)
    jax.block_until_ready(out)

    assert out.shape == (BATCH, NUM_PIXELS, OUTPUT_DIMS), out.shape
    assert bool(jnp.all(jnp.isfinite(out))), "non-finite output"

    ref = mlp_reference(data, params, output_dims=OUTPUT_DIMS)
    max_err = float(jnp.max(jnp.abs(out - ref)))
    assert max_err < 5e-2, f"mismatch vs f32 reference: max abs err {max_err}"
    print("KERNEL_OK")
</pallas_src>

<mosaic_0001>
module attributes {stable_mosaic.version = 11 : i64} {
  func.func @_mlp_kernel(%arg0: i32, %arg1: i32, %arg2: i32, %arg3: memref<24x128xbf16, #tpu.memory_space<any>>, %arg4: memref<1x128x128xbf16, #tpu.memory_space<vmem>>, %arg5: memref<1x128x128xbf16, #tpu.memory_space<vmem>>, %arg6: memref<1x4x128xf32, #tpu.memory_space<vmem>>, %arg7: memref<128x128xbf16, #tpu.memory_space<vmem>>, %arg8: memref<1x128xf32, #tpu.memory_space<vmem>>, %arg9: memref<24x128xbf16, #tpu.memory_space<any>>, %arg10: memref<24x128xf32, #tpu.memory_space<any>>, %arg11: memref<2x8x128xbf16, #tpu.memory_space<vmem>>, %arg12: memref<8x128xbf16, #tpu.memory_space<vmem>>, %arg13: memref<8x128xf32, #tpu.memory_space<vmem>>, %arg14: memref<2x128xf32, #tpu.memory_space<vmem>>, %arg15: memref<4x128xf32, #tpu.memory_space<vmem>>, %arg16: memref<2x!tpu.dma_semaphore, #tpu.memory_space<semaphore_mem>>, %arg17: memref<!tpu.dma_semaphore, #tpu.memory_space<semaphore_mem>>) attributes {dimension_semantics = [#tpu.dimension_semantics<arbitrary>, #tpu.dimension_semantics<arbitrary>, #tpu.dimension_semantics<arbitrary>], iteration_bounds = array<i64: 2, 3, 3>, scalar_prefetch = 0 : i64, scratch_operands = 7 : i64, tpu.core_type = #tpu.core_type<tc>, window_params = [{}, {transform_indices = @transform_1, window_bounds = array<i64: 1, 128, 128>}, {transform_indices = @transform_2, window_bounds = array<i64: 1, 128, 128>}, {transform_indices = @transform_3, window_bounds = array<i64: 1, 4, 128>}, {pipeline_mode = #tpu.pipeline_mode<synchronous>, transform_indices = @transform_4, window_bounds = array<i64: 128, 128>}, {pipeline_mode = #tpu.pipeline_mode<synchronous>, transform_indices = @transform_5, window_bounds = array<i64: 1, 128>}, {}, {}]} {
    %c3_i32 = arith.constant 3 : i32
    %0 = arith.muli %arg0, %c3_i32 : i32
    %1 = arith.addi %0, %arg1 : i32
    %c3_i32_0 = arith.constant 3 : i32
    %2 = arith.muli %1, %c3_i32_0 : i32
    %3 = arith.addi %2, %arg2 : i32
    %c2_i32 = arith.constant 2 : i32
    %4 = arith.remsi %3, %c2_i32 : i32
    %c1_i32 = arith.constant 1 : i32
    %5 = arith.subi %c1_i32, %4 : i32
    %c8_i32 = arith.constant 8 : i32
    %6 = arith.muli %arg2, %c8_i32 : i32
    %7 = tpu.assume_multiple %6, 8 : i32
    %c1_i32_1 = arith.constant 1 : i32
    %8 = arith.addi %arg2, %c1_i32_1 : i32
    %c3_i32_2 = arith.constant 3 : i32
    %9 = arith.remsi %8, %c3_i32_2 : i32
    %c8_i32_3 = arith.constant 8 : i32
    %10 = arith.muli %9, %c8_i32_3 : i32
    %11 = tpu.assume_multiple %10, 8 : i32
    %c0_i32 = arith.constant 0 : i32
    %12 = arith.cmpi eq, %arg0, %c0_i32 : i32
    %c0_i32_4 = arith.constant 0 : i32
    %13 = arith.cmpi eq, %arg1, %c0_i32_4 : i32
    %14 = arith.andi %12, %13 : i1
    %c0_i32_5 = arith.constant 0 : i32
    %15 = arith.cmpi eq, %arg2, %c0_i32_5 : i32
    %16 = arith.andi %14, %15 : i1
    %c1_i32_6 = arith.constant 1 : i32
    %17 = arith.cmpi eq, %arg0, %c1_i32_6 : i32
    %c2_i32_7 = arith.constant 2 : i32
    %18 = arith.cmpi eq, %arg1, %c2_i32_7 : i32
    %19 = arith.andi %17, %18 : i1
    %c2_i32_8 = arith.constant 2 : i32
    %20 = arith.cmpi eq, %arg2, %c2_i32_8 : i32
    %21 = arith.andi %19, %20 : i1
    %22 = arith.extui %16 : i1 to i32
    %c0_i32_9 = arith.constant 0 : i32
    %23 = arith.cmpi ne, %22, %c0_i32_9 : i32
    scf.if %23 {
      %c0_i32_39 = arith.constant 0 : i32
      %68 = tpu.memref_slice %arg9[%7, %c0_i32_39] : memref<24x128xbf16, #tpu.memory_space<any>> -> memref<8x128xbf16, #tpu.memory_space<any>>
      %c0_i32_40 = arith.constant 0 : i32
      %c0_i32_41 = arith.constant 0 : i32
      %69 = tpu.memref_slice %arg11[%4, %c0_i32_40, %c0_i32_41] : memref<2x8x128xbf16, #tpu.memory_space<vmem>> -> memref<1x8x128xbf16, #tpu.memory_space<vmem>>
      %70 = tpu.memref_squeeze %69 : memref<1x8x128xbf16, #tpu.memory_space<vmem>> -> memref<8x128xbf16, #tpu.memory_space<vmem>>
      %71 = tpu.memref_slice %arg16[%4] : memref<2x!tpu.dma_semaphore, #tpu.memory_space<semaphore_mem>> -> memref<1x!tpu.dma_semaphore, #tpu.memory_space<semaphore_mem>>
      %72 = tpu.memref_squeeze %71 : memref<1x!tpu.dma_semaphore, #tpu.memory_space<semaphore_mem>> -> memref<!tpu.dma_semaphore, #tpu.memory_space<semaphore_mem>>
      tpu.enqueue_dma source(%68 : memref<8x128xbf16, #tpu.memory_space<any>>) target(%70 : memref<8x128xbf16, #tpu.memory_space<vmem>>) target_semaphore(%72 : memref<!tpu.dma_semaphore, #tpu.memory_space<semaphore_mem>>)
    } else {
    }
    %c0_i32_10 = arith.constant 0 : i32
    %24 = tpu.memref_slice %arg9[%7, %c0_i32_10] : memref<24x128xbf16, #tpu.memory_space<any>> -> memref<8x128xbf16, #tpu.memory_space<any>>
    %c0_i32_11 = arith.constant 0 : i32
    %c0_i32_12 = arith.constant 0 : i32
    %25 = tpu.memref_slice %arg11[%4, %c0_i32_11, %c0_i32_12] : memref<2x8x128xbf16, #tpu.memory_space<vmem>> -> memref<1x8x128xbf16, #tpu.memory_space<vmem>>
    %26 = tpu.memref_squeeze %25 : memref<1x8x128xbf16, #tpu.memory_space<vmem>> -> memref<8x128xbf16, #tpu.memory_space<vmem>>
    %27 = tpu.memref_slice %arg16[%4] : memref<2x!tpu.dma_semaphore, #tpu.memory_space<semaphore_mem>> -> memref<1x!tpu.dma_semaphore, #tpu.memory_space<semaphore_mem>>
    %28 = tpu.memref_squeeze %27 : memref<1x!tpu.dma_semaphore, #tpu.memory_space<semaphore_mem>> -> memref<!tpu.dma_semaphore, #tpu.memory_space<semaphore_mem>>
    tpu.wait_dma2 semaphore(%28 : memref<!tpu.dma_semaphore, #tpu.memory_space<semaphore_mem>>) src(%24 : memref<8x128xbf16, #tpu.memory_space<any>>) dst(%26 : memref<8x128xbf16, #tpu.memory_space<vmem>>)
    %c2_i32_13 = arith.constant 2 : i32
    %29 = arith.cmpi slt, %arg1, %c2_i32_13 : i32
    %30 = arith.extui %29 : i1 to i32
    %c0_i32_14 = arith.constant 0 : i32
    %31 = arith.cmpi ne, %30, %c0_i32_14 : i32
    scf.if %31 {
      %c0_i32_39 = arith.constant 0 : i32
      %68 = tpu.memref_slice %arg9[%11, %c0_i32_39] : memref<24x128xbf16, #tpu.memory_space<any>> -> memref<8x128xbf16, #tpu.memory_space<any>>
      %c0_i32_40 = arith.constant 0 : i32
      %c0_i32_41 = arith.constant 0 : i32
      %69 = tpu.memref_slice %arg11[%5, %c0_i32_40, %c0_i32_41] : memref<2x8x128xbf16, #tpu.memory_space<vmem>> -> memref<1x8x128xbf16, #tpu.memory_space<vmem>>
      %70 = tpu.memref_squeeze %69 : memref<1x8x128xbf16, #tpu.memory_space<vmem>> -> memref<8x128xbf16, #tpu.memory_space<vmem>>
      %71 = tpu.memref_slice %arg16[%5] : memref<2x!tpu.dma_semaphore, #tpu.memory_space<semaphore_mem>> -> memref<1x!tpu.dma_semaphore, #tpu.memory_space<semaphore_mem>>
      %72 = tpu.memref_squeeze %71 : memref<1x!tpu.dma_semaphore, #tpu.memory_space<semaphore_mem>> -> memref<!tpu.dma_semaphore, #tpu.memory_space<semaphore_mem>>
      tpu.enqueue_dma source(%68 : memref<8x128xbf16, #tpu.memory_space<any>>) target(%70 : memref<8x128xbf16, #tpu.memory_space<vmem>>) target_semaphore(%72 : memref<!tpu.dma_semaphore, #tpu.memory_space<semaphore_mem>>)
    } else {
    }
    %32 = arith.index_cast %4 : i32 to index
    %c0 = arith.constant 0 : index
    %c0_15 = arith.constant 0 : index
    %33 = vector.load %arg11[%32, %c0, %c0_15] : memref<2x8x128xbf16, #tpu.memory_space<vmem>>, vector<1x8x128xbf16>
    %34 = vector.shape_cast %33 : vector<1x8x128xbf16> to vector<8x128xbf16>
    %c0_16 = arith.constant 0 : index
    %c0_17 = arith.constant 0 : index
    %c0_18 = arith.constant 0 : index
    %35 = vector.load %arg4[%c0_16, %c0_17, %c0_18] : memref<1x128x128xbf16, #tpu.memory_space<vmem>>, vector<1x128x128xbf16>
    %36 = vector.shape_cast %35 : vector<1x128x128xbf16> to vector<128x128xbf16>
    %c0_19 = arith.constant 0 : index
    %c0_20 = arith.constant 0 : index
    %c0_21 = arith.constant 0 : index
    %37 = vector.load %arg5[%c0_19, %c0_20, %c0_21] : memref<1x128x128xbf16, #tpu.memory_space<vmem>>, vector<1x128x128xbf16>
    %38 = vector.shape_cast %37 : vector<1x128x128xbf16> to vector<128x128xbf16>
    %c0_i32_22 = arith.constant 0 : i32
    %39 = arith.cmpi eq, %arg1, %c0_i32_22 : i32
    %c0_i32_23 = arith.constant 0 : i32
    %40 = arith.cmpi eq, %arg2, %c0_i32_23 : i32
    %41 = arith.andi %39, %40 : i1
    %42 = arith.extui %41 : i1 to i32
    %c0_i32_24 = arith.constant 0 : i32
    %43 = arith.cmpi ne, %42, %c0_i32_24 : i32
    scf.if %43 {
      %cst = arith.constant 0.000000e+00 : f32
      %68 = vector.broadcast %cst : f32 to vector<2x128xf32>
      %c0_39 = arith.constant 0 : index
      %c0_40 = arith.constant 0 : index
      %69 = vector.load %arg14[%c0_39, %c0_40] : memref<2x128xf32, #tpu.memory_space<vmem>>, vector<2x128xf32>
      tpu.vector_store %arg14[%c0_39, %c0_40], %68 {strides = array<i32>} : memref<2x128xf32, #tpu.memory_space<vmem>>, vector<2x128xf32>,
    } else {
    }
    %c1_i32_25 = arith.constant 1 : i32
    %44 = arith.cmpi eq, %arg1, %c1_i32_25 : i32
    %c0_i32_26 = arith.constant 0 : i32
    %45 = arith.cmpi eq, %arg2, %c0_i32_26 : i32
    %46 = arith.andi %44, %45 : i1
    %47 = arith.extui %46 : i1 to i32
    %c0_i32_27 = arith.constant 0 : i32
    %48 = arith.cmpi ne, %47, %c0_i32_27 : i32
    scf.if %48 {
      %c0_39 = arith.constant 0 : index
      %c0_40 = arith.constant 0 : index
      %c0_41 = arith.constant 0 : index
      %68 = vector.load %arg6[%c0_39, %c0_40, %c0_41] : memref<1x4x128xf32, #tpu.memory_space<vmem>>, vector<1x1x128xf32>
      %69 = vector.shape_cast %68 : vector<1x1x128xf32> to vector<1x128xf32>
      %c0_42 = arith.constant 0 : index
      %c1 = arith.constant 1 : index
      %c0_43 = arith.constant 0 : index
      %70 = vector.load %arg6[%c0_42, %c1, %c0_43] : memref<1x4x128xf32, #tpu.memory_space<vmem>>, vector<1x1x128xf32>
      %71 = vector.shape_cast %70 : vector<1x1x128xf32> to vector<1x128xf32>
      %c0_44 = arith.constant 0 : index
      %c0_45 = arith.constant 0 : index
      %72 = vector.load %arg14[%c0_44, %c0_45] : memref<2x128xf32, #tpu.memory_space<vmem>>, vector<1x128xf32>
      %cst = arith.constant 0.055555556 : f32
      %73 = vector.broadcast %cst : f32 to vector<1x128xf32>
      %74 = arith.mulf %72, %73 : vector<1x128xf32>
      %c1_46 = arith.constant 1 : index
      %c0_47 = arith.constant 0 : index
      %75 = vector.load %arg14[%c1_46, %c0_47] : memref<2x128xf32, #tpu.memory_space<vmem>>, vector<1x128xf32>
      %cst_48 = arith.constant 0.055555556 : f32
      %76 = vector.broadcast %cst_48 : f32 to vector<1x128xf32>
      %77 = arith.mulf %75, %76 : vector<1x128xf32>
      %78 = arith.mulf %74, %74 : vector<1x128xf32>
      %79 = arith.subf %77, %78 : vector<1x128xf32>
      %cst_49 = arith.constant 0.000000e+00 : f32
      %80 = vector.broadcast %cst_49 : f32 to vector<1x128xf32>
      %81 = arith.maximumf %79, %80 : vector<1x128xf32>
      %cst_50 = arith.constant 9.99999974E-6 : f32
      %82 = vector.broadcast %cst_50 : f32 to vector<1x128xf32>
      %83 = arith.addf %81, %82 : vector<1x128xf32>
      %84 = math.rsqrt %83 : vector<1x128xf32>
      %85 = arith.mulf %69, %84 : vector<1x128xf32>
      %c0_51 = arith.constant 0 : index
      %c0_52 = arith.constant 0 : index
      %86 = vector.load %arg15[%c0_51, %c0_52] : memref<4x128xf32, #tpu.memory_space<vmem>>, vector<1x128xf32>
      tpu.vector_store %arg15[%c0_51, %c0_52], %85 {strides = array<i32>} : memref<4x128xf32, #tpu.memory_space<vmem>>, vector<1x128xf32>,
      %87 = arith.mulf %74, %85 : vector<1x128xf32>
      %88 = arith.subf %71, %87 : vector<1x128xf32>
      %c1_53 = arith.constant 1 : index
      %c0_54 = arith.constant 0 : index
      %89 = vector.load %arg15[%c1_53, %c0_54] : memref<4x128xf32, #tpu.memory_space<vmem>>, vector<1x128xf32>
      tpu.vector_store %arg15[%c1_53, %c0_54], %88 {strides = array<i32>} : memref<4x128xf32, #tpu.memory_space<vmem>>, vector<1x128xf32>,
      %cst_55 = arith.constant 0.000000e+00 : f32
      %90 = vector.broadcast %cst_55 : f32 to vector<2x128xf32>
      %c0_56 = arith.constant 0 : index
      %c0_57 = arith.constant 0 : index
      %91 = vector.load %arg14[%c0_56, %c0_57] : memref<2x128xf32, #tpu.memory_space<vmem>>, vector<2x128xf32>
      tpu.vector_store %arg14[%c0_56, %c0_57], %90 {strides = array<i32>} : memref<2x128xf32, #tpu.memory_space<vmem>>, vector<2x128xf32>,
    } else {
    }
    %c2_i32_28 = arith.constant 2 : i32
    %49 = arith.cmpi eq, %arg1, %c2_i32_28 : i32
    %c0_i32_29 = arith.constant 0 : i32
    %50 = arith.cmpi eq, %arg2, %c0_i32_29 : i32
    %51 = arith.andi %49, %50 : i1
    %52 = arith.extui %51 : i1 to i32
    %c0_i32_30 = arith.constant 0 : i32
    %53 = arith.cmpi ne, %52, %c0_i32_30 : i32
    scf.if %53 {
      %c0_39 = arith.constant 0 : index
      %c2 = arith.constant 2 : index
      %c0_40 = arith.constant 0 : index
      %68 = vector.load %arg6[%c0_39, %c2, %c0_40] : memref<1x4x128xf32, #tpu.memory_space<vmem>>, vector<1x1x128xf32>
      %69 = vector.shape_cast %68 : vector<1x1x128xf32> to vector<1x128xf32>
      %c0_41 = arith.constant 0 : index
      %c3 = arith.constant 3 : index
      %c0_42 = arith.constant 0 : index
      %70 = vector.load %arg6[%c0_41, %c3, %c0_42] : memref<1x4x128xf32, #tpu.memory_space<vmem>>, vector<1x1x128xf32>
      %71 = vector.shape_cast %70 : vector<1x1x128xf32> to vector<1x128xf32>
      %c0_43 = arith.constant 0 : index
      %c0_44 = arith.constant 0 : index
      %72 = vector.load %arg14[%c0_43, %c0_44] : memref<2x128xf32, #tpu.memory_space<vmem>>, vector<1x128xf32>
      %cst = arith.constant 0.055555556 : f32
      %73 = vector.broadcast %cst : f32 to vector<1x128xf32>
      %74 = arith.mulf %72, %73 : vector<1x128xf32>
      %c1 = arith.constant 1 : index
      %c0_45 = arith.constant 0 : index
      %75 = vector.load %arg14[%c1, %c0_45] : memref<2x128xf32, #tpu.memory_space<vmem>>, vector<1x128xf32>
      %cst_46 = arith.constant 0.055555556 : f32
      %76 = vector.broadcast %cst_46 : f32 to vector<1x128xf32>
      %77 = arith.mulf %75, %76 : vector<1x128xf32>
      %78 = arith.mulf %74, %74 : vector<1x128xf32>
      %79 = arith.subf %77, %78 : vector<1x128xf32>
      %cst_47 = arith.constant 0.000000e+00 : f32
      %80 = vector.broadcast %cst_47 : f32 to vector<1x128xf32>
      %81 = arith.maximumf %79, %80 : vector<1x128xf32>
      %cst_48 = arith.constant 9.99999974E-6 : f32
      %82 = vector.broadcast %cst_48 : f32 to vector<1x128xf32>
      %83 = arith.addf %81, %82 : vector<1x128xf32>
      %84 = math.rsqrt %83 : vector<1x128xf32>
      %85 = arith.mulf %69, %84 : vector<1x128xf32>
      %c2_49 = arith.constant 2 : index
      %c0_50 = arith.constant 0 : index
      %86 = vector.load %arg15[%c2_49, %c0_50] : memref<4x128xf32, #tpu.memory_space<vmem>>, vector<1x128xf32>
      tpu.vector_store %arg15[%c2_49, %c0_50], %85 {strides = array<i32>} : memref<4x128xf32, #tpu.memory_space<vmem>>, vector<1x128xf32>,
      %87 = arith.mulf %74, %85 : vector<1x128xf32>
      %88 = arith.subf %71, %87 : vector<1x128xf32>
      %c3_51 = arith.constant 3 : index
      %c0_52 = arith.constant 0 : index
      %89 = vector.load %arg15[%c3_51, %c0_52] : memref<4x128xf32, #tpu.memory_space<vmem>>, vector<1x128xf32>
      tpu.vector_store %arg15[%c3_51, %c0_52], %88 {strides = array<i32>} : memref<4x128xf32, #tpu.memory_space<vmem>>, vector<1x128xf32>,
    } else {
    }
    %c0_i32_31 = arith.constant 0 : i32
    %54 = arith.cmpi eq, %arg1, %c0_i32_31 : i32
    %55 = arith.extui %54 : i1 to i32
    %c0_i32_32 = arith.constant 0 : i32
    %56 = arith.cmpi ne, %55, %c0_i32_32 : i32
    scf.if %56 {
      %cst = arith.constant dense<0.000000e+00> : vector<8x128xf32>
      %68 = tpu.matmul %34, %36, %cst {dimension_numbers = #tpu.dot_dimension_numbers<[1], [0], [0], [1], [0, 0, 1, 1], [], []>} : vector<8x128xbf16>, vector<128x128xbf16>, vector<8x128xf32> -> vector<8x128xf32>
      %69 = tpu.iota {dimensions = array<i32: 0>} : vector<8x1xi32>
      %70 = vector.broadcast %7 : i32 to vector<8x1xi32>
      %71 = arith.addi %70, %69 : vector<8x1xi32>
      %c18_i32 = arith.constant 18 : i32
      %72 = vector.broadcast %c18_i32 : i32 to vector<8x1xi32>
      %73 = arith.cmpi slt, %71, %72 : vector<8x1xi32>
      %74 = arith.extui %73 : vector<8x1xi1> to vector<8x1xi32>
      %75 = arith.sitofp %74 : vector<8x1xi32> to vector<8x1xf32>
      %76 = vector.broadcast %75 : vector<8x1xf32> to vector<8x128xf32>
      %77 = arith.mulf %68, %76 : vector<8x128xf32>
      %c0_39 = arith.constant 0 : index
      %c0_40 = arith.constant 0 : index
      %78 = vector.load %arg14[%c0_39, %c0_40] : memref<2x128xf32, #tpu.memory_space<vmem>>, vector<1x128xf32>
      %cst_41 = arith.constant dense<0.000000e+00> : vector<128xf32>
      %79 = vector.multi_reduction <add>, %77, %cst_41 [0] : vector<8x128xf32> to vector<128xf32>
      %80 = vector.shape_cast %79 : vector<128xf32> to vector<1x128xf32>
      %81 = arith.addf %78, %80 : vector<1x128xf32>
      %c0_42 = arith.constant 0 : index
      %c0_43 = arith.constant 0 : index
      %82 = vector.load %arg14[%c0_42, %c0_43] : memref<2x128xf32, #tpu.memory_space<vmem>>, vector<1x128xf32>
      tpu.vector_store %arg14[%c0_42, %c0_43], %81 {strides = array<i32>} : memref<2x128xf32, #tpu.memory_space<vmem>>, vector<1x128xf32>,
      %c1 = arith.constant 1 : index
      %c0_44 = arith.constant 0 : index
      %83 = vector.load %arg14[%c1, %c0_44] : memref<2x128xf32, #tpu.memory_space<vmem>>, vector<1x128xf32>
      %84 = arith.mulf %77, %68 : vector<8x128xf32>
      %cst_45 = arith.constant dense<0.000000e+00> : vector<128xf32>
      %85 = vector.multi_reduction <add>, %84, %cst_45 [0] : vector<8x128xf32> to vector<128xf32>
      %86 = vector.shape_cast %85 : vector<128xf32> to vector<1x128xf32>
      %87 = arith.addf %83, %86 : vector<1x128xf32>
      %c1_46 = arith.constant 1 : index
      %c0_47 = arith.constant 0 : index
      %88 = vector.load %arg14[%c1_46, %c0_47] : memref<2x128xf32, #tpu.memory_space<vmem>>, vector<1x128xf32>
      tpu.vector_store %arg14[%c1_46, %c0_47], %87 {strides = array<i32>} : memref<2x128xf32, #tpu.memory_space<vmem>>, vector<1x128xf32>,
    } else {
    }
    %c1_i32_33 = arith.constant 1 : i32
    %57 = arith.cmpi eq, %arg1, %c1_i32_33 : i32
    %58 = arith.extui %57 : i1 to i32
    %c0_i32_34 = arith.constant 0 : i32
    %59 = arith.cmpi ne, %58, %c0_i32_34 : i32
    scf.if %59 {
      %cst = arith.constant dense<0.000000e+00> : vector<8x128xf32>
      %68 = tpu.matmul %34, %36, %cst {dimension_numbers = #tpu.dot_dimension_numbers<[1], [0], [0], [1], [0, 0, 1, 1], [], []>} : vector<8x128xbf16>, vector<128x128xbf16>, vector<8x128xf32> -> vector<8x128xf32>
      %c0_39 = arith.constant 0 : index
      %c0_40 = arith.constant 0 : index
      %69 = vector.load %arg15[%c0_39, %c0_40] : memref<4x128xf32, #tpu.memory_space<vmem>>, vector<1x128xf32>
      %70 = vector.broadcast %69 : vector<1x128xf32> to vector<8x128xf32>
      %71 = arith.mulf %68, %70 : vector<8x128xf32>
      %c1 = arith.constant 1 : index
      %c0_41 = arith.constant 0 : index
      %72 = vector.load %arg15[%c1, %c0_41] : memref<4x128xf32, #tpu.memory_space<vmem>>, vector<1x128xf32>
      %73 = vector.broadcast %72 : vector<1x128xf32> to vector<8x128xf32>
      %74 = arith.addf %71, %73 : vector<8x128xf32>
      %cst_42 = arith.constant 0.000000e+00 : f32
      %75 = vector.broadcast %cst_42 : f32 to vector<8x128xf32>
      %76 = arith.maximumf %74, %75 : vector<8x128xf32>
      %77 = arith.truncf %76 : vector<8x128xf32> to vector<8x128xbf16>
      %cst_43 = arith.constant dense<0.000000e+00> : vector<8x128xf32>
      %78 = tpu.matmul %77, %38, %cst_43 {dimension_numbers = #tpu.dot_dimension_numbers<[1], [0], [0], [1], [0, 0, 1, 1], [], []>} : vector<8x128xbf16>, vector<128x128xbf16>, vector<8x128xf32> -> vector<8x128xf32>
      %79 = tpu.iota {dimensions = array<i32: 0>} : vector<8x1xi32>
      %80 = vector.broadcast %7 : i32 to vector<8x1xi32>
      %81 = arith.addi %80, %79 : vector<8x1xi32>
      %c18_i32 = arith.constant 18 : i32
      %82 = vector.broadcast %c18_i32 : i32 to vector<8x1xi32>
      %83 = arith.cmpi slt, %81, %82 : vector<8x1xi32>
      %84 = arith.extui %83 : vector<8x1xi1> to vector<8x1xi32>
      %85 = arith.sitofp %84 : vector<8x1xi32> to vector<8x1xf32>
      %86 = vector.broadcast %85 : vector<8x1xf32> to vector<8x128xf32>
      %87 = arith.mulf %78, %86 : vector<8x128xf32>
      %c0_44 = arith.constant 0 : index
      %c0_45 = arith.constant 0 : index
      %88 = vector.load %arg14[%c0_44, %c0_45] : memref<2x128xf32, #tpu.memory_space<vmem>>, vector<1x128xf32>
      %cst_46 = arith.constant dense<0.000000e+00> : vector<128xf32>
      %89 = vector.multi_reduction <add>, %87, %cst_46 [0] : vector<8x128xf32> to vector<128xf32>
      %90 = vector.shape_cast %89 : vector<128xf32> to vector<1x128xf32>
      %91 = arith.addf %88, %90 : vector<1x128xf32>
      %c0_47 = arith.constant 0 : index
      %c0_48 = arith.constant 0 : index
      %92 = vector.load %arg14[%c0_47, %c0_48] : memref<2x128xf32, #tpu.memory_space<vmem>>, vector<1x128xf32>
      tpu.vector_store %arg14[%c0_47, %c0_48], %91 {strides = array<i32>} : memref<2x128xf32, #tpu.memory_space<vmem>>, vector<1x128xf32>,
      %c1_49 = arith.constant 1 : index
      %c0_50 = arith.constant 0 : index
      %93 = vector.load %arg14[%c1_49, %c0_50] : memref<2x128xf32, #tpu.memory_space<vmem>>, vector<1x128xf32>
      %94 = arith.mulf %87, %78 : vector<8x128xf32>
      %cst_51 = arith.constant dense<0.000000e+00> : vector<128xf32>
      %95 = vector.multi_reduction <add>, %94, %cst_51 [0] : vector<8x128xf32> to vector<128xf32>
      %96 = vector.shape_cast %95 : vector<128xf32> to vector<1x128xf32>
      %97 = arith.addf %93, %96 : vector<1x128xf32>
      %c1_52 = arith.constant 1 : index
      %c0_53 = arith.constant 0 : index
      %98 = vector.load %arg14[%c1_52, %c0_53] : memref<2x128xf32, #tpu.memory_space<vmem>>, vector<1x128xf32>
      tpu.vector_store %arg14[%c1_52, %c0_53], %97 {strides = array<i32>} : memref<2x128xf32, #tpu.memory_space<vmem>>, vector<1x128xf32>,
    } else {
    }
    %c2_i32_35 = arith.constant 2 : i32
    %60 = arith.cmpi eq, %arg1, %c2_i32_35 : i32
    %61 = arith.extui %60 : i1 to i32
    %c0_i32_36 = arith.constant 0 : i32
    %62 = arith.cmpi ne, %61, %c0_i32_36 : i32
    scf.if %62 {
      %cst = arith.constant dense<0.000000e+00> : vector<8x128xf32>
      %68 = tpu.matmul %34, %36, %cst {dimension_numbers = #tpu.dot_dimension_numbers<[1], [0], [0], [1], [0, 0, 1, 1], [], []>} : vector<8x128xbf16>, vector<128x128xbf16>, vector<8x128xf32> -> vector<8x128xf32>
      %c0_39 = arith.constant 0 : index
      %c0_40 = arith.constant 0 : index
      %69 = vector.load %arg15[%c0_39, %c0_40] : memref<4x128xf32, #tpu.memory_space<vmem>>, vector<1x128xf32>
      %70 = vector.broadcast %69 : vector<1x128xf32> to vector<8x128xf32>
      %71 = arith.mulf %68, %70 : vector<8x128xf32>
      %c1 = arith.constant 1 : index
      %c0_41 = arith.constant 0 : index
      %72 = vector.load %arg15[%c1, %c0_41] : memref<4x128xf32, #tpu.memory_space<vmem>>, vector<1x128xf32>
      %73 = vector.broadcast %72 : vector<1x128xf32> to vector<8x128xf32>
      %74 = arith.addf %71, %73 : vector<8x128xf32>
      %cst_42 = arith.constant 0.000000e+00 : f32
      %75 = vector.broadcast %cst_42 : f32 to vector<8x128xf32>
      %76 = arith.maximumf %74, %75 : vector<8x128xf32>
      %77 = arith.truncf %76 : vector<8x128xf32> to vector<8x128xbf16>
      %cst_43 = arith.constant dense<0.000000e+00> : vector<8x128xf32>
      %78 = tpu.matmul %77, %38, %cst_43 {dimension_numbers = #tpu.dot_dimension_numbers<[1], [0], [0], [1], [0, 0, 1, 1], [], []>} : vector<8x128xbf16>, vector<128x128xbf16>, vector<8x128xf32> -> vector<8x128xf32>
      %79 = arith.extf %34 : vector<8x128xbf16> to vector<8x128xf32>
      %c2 = arith.constant 2 : index
      %c0_44 = arith.constant 0 : index
      %80 = vector.load %arg15[%c2, %c0_44] : memref<4x128xf32, #tpu.memory_space<vmem>>, vector<1x128xf32>
      %81 = vector.broadcast %80 : vector<1x128xf32> to vector<8x128xf32>
      %82 = arith.mulf %78, %81 : vector<8x128xf32>
      %c3 = arith.constant 3 : index
      %c0_45 = arith.constant 0 : index
      %83 = vector.load %arg15[%c3, %c0_45] : memref<4x128xf32, #tpu.memory_space<vmem>>, vector<1x128xf32>
      %84 = vector.broadcast %83 : vector<1x128xf32> to vector<8x128xf32>
      %85 = arith.addf %82, %84 : vector<8x128xf32>
      %86 = arith.addf %85, %79 : vector<8x128xf32>
      %cst_46 = arith.constant 0.000000e+00 : f32
      %87 = vector.broadcast %cst_46 : f32 to vector<8x128xf32>
      %88 = arith.maximumf %86, %87 : vector<8x128xf32>
      %c1_i32_47 = arith.constant 1 : i32
      %89 = arith.cmpi slt, %arg0, %c1_i32_47 : i32
      %90 = arith.extui %89 : i1 to i32
      %c0_i32_48 = arith.constant 0 : i32
      %91 = arith.cmpi ne, %90, %c0_i32_48 : i32
      scf.if %91 {
        %95 = arith.truncf %88 : vector<8x128xf32> to vector<8x128xbf16>
        %c0_51 = arith.constant 0 : index
        %c0_52 = arith.constant 0 : index
        %96 = vector.load %arg12[%c0_51, %c0_52] : memref<8x128xbf16, #tpu.memory_space<vmem>>, vector<8x128xbf16>
        tpu.vector_store %arg12[%c0_51, %c0_52], %95 {strides = array<i32>} : memref<8x128xbf16, #tpu.memory_space<vmem>>, vector<8x128xbf16>,
        %c0_i32_53 = arith.constant 0 : i32
        %97 = tpu.memref_slice %arg9[%7, %c0_i32_53] : memref<24x128xbf16, #tpu.memory_space<any>> -> memref<8x128xbf16, #tpu.memory_space<any>>
        tpu.enqueue_dma source(%arg12 : memref<8x128xbf16, #tpu.memory_space<vmem>>) target(%97 : memref<8x128xbf16, #tpu.memory_space<any>>) target_semaphore(%arg17 : memref<!tpu.dma_semaphore, #tpu.memory_space<semaphore_mem>>)
        %c0_i32_54 = arith.constant 0 : i32
        %98 = tpu.memref_slice %arg9[%7, %c0_i32_54] : memref<24x128xbf16, #tpu.memory_space<any>> -> memref<8x128xbf16, #tpu.memory_space<any>>
        tpu.wait_dma2 semaphore(%arg17 : memref<!tpu.dma_semaphore, #tpu.memory_space<semaphore_mem>>) src(%arg12 : memref<8x128xbf16, #tpu.memory_space<vmem>>) dst(%98 : memref<8x128xbf16, #tpu.memory_space<any>>)
      } else {
      }
      %c1_i32_49 = arith.constant 1 : i32
      %92 = arith.cmpi eq, %arg0, %c1_i32_49 : i32
      %93 = arith.extui %92 : i1 to i32
      %c0_i32_50 = arith.constant 0 : i32
      %94 = arith.cmpi ne, %93, %c0_i32_50 : i32
      scf.if %94 {
        %95 = arith.truncf %88 : vector<8x128xf32> to vector<8x128xbf16>
        %c0_51 = arith.constant 0 : index
        %c0_52 = arith.constant 0 : index
        %96 = vector.load %arg7[%c0_51, %c0_52] : memref<128x128xbf16, #tpu.memory_space<vmem>>, vector<128x128xbf16>
        %cst_53 = arith.constant dense<0.000000e+00> : vector<8x128xf32>
        %97 = tpu.matmul %95, %96, %cst_53 {dimension_numbers = #tpu.dot_dimension_numbers<[1], [0], [0], [1], [0, 0, 1, 1], [], []>} : vector<8x128xbf16>, vector<128x128xbf16>, vector<8x128xf32> -> vector<8x128xf32>
        %c0_54 = arith.constant 0 : index
        %c0_55 = arith.constant 0 : index
        %98 = vector.load %arg8[%c0_54, %c0_55] : memref<1x128xf32, #tpu.memory_space<vmem>>, vector<1x128xf32>
        %99 = vector.broadcast %98 : vector<1x128xf32> to vector<8x128xf32>
        %100 = arith.addf %97, %99 : vector<8x128xf32>
        %c0_56 = arith.constant 0 : index
        %c0_57 = arith.constant 0 : index
        %101 = vector.load %arg13[%c0_56, %c0_57] : memref<8x128xf32, #tpu.memory_space<vmem>>, vector<8x128xf32>
        tpu.vector_store %arg13[%c0_56, %c0_57], %100 {strides = array<i32>} : memref<8x128xf32, #tpu.memory_space<vmem>>, vector<8x128xf32>,
        %c0_i32_58 = arith.constant 0 : i32
        %102 = tpu.memref_slice %arg10[%7, %c0_i32_58] : memref<24x128xf32, #tpu.memory_space<any>> -> memref<8x128xf32, #tpu.memory_space<any>>
        tpu.enqueue_dma source(%arg13 : memref<8x128xf32, #tpu.memory_space<vmem>>) target(%102 : memref<8x128xf32, #tpu.memory_space<any>>) target_semaphore(%arg17 : memref<!tpu.dma_semaphore, #tpu.memory_space<semaphore_mem>>)
        %c0_i32_59 = arith.constant 0 : i32
        %103 = tpu.memref_slice %arg10[%7, %c0_i32_59] : memref<24x128xf32, #tpu.memory_space<any>> -> memref<8x128xf32, #tpu.memory_space<any>>
        tpu.wait_dma2 semaphore(%arg17 : memref<!tpu.dma_semaphore, #tpu.memory_space<semaphore_mem>>) src(%arg13 : memref<8x128xf32, #tpu.memory_space<vmem>>) dst(%103 : memref<8x128xf32, #tpu.memory_space<any>>)
      } else {
      }
    } else {
    }
    %c2_i32_37 = arith.constant 2 : i32
    %63 = arith.cmpi eq, %arg1, %c2_i32_37 : i32
    %true = arith.constant true
    %64 = arith.xori %21, %true : i1
    %65 = arith.andi %63, %64 : i1
    %66 = arith.extui %65 : i1 to i32
    %c0_i32_38 = arith.constant 0 : i32
    %67 = arith.cmpi ne, %66, %c0_i32_38 : i32
    scf.if %67 {
      %c0_i32_39 = arith.constant 0 : i32
      %68 = tpu.memref_slice %arg9[%11, %c0_i32_39] : memref<24x128xbf16, #tpu.memory_space<any>> -> memref<8x128xbf16, #tpu.memory_space<any>>
      %c0_i32_40 = arith.constant 0 : i32
      %c0_i32_41 = arith.constant 0 : i32
      %69 = tpu.memref_slice %arg11[%5, %c0_i32_40, %c0_i32_41] : memref<2x8x128xbf16, #tpu.memory_space<vmem>> -> memref<1x8x128xbf16, #tpu.memory_space<vmem>>
      %70 = tpu.memref_squeeze %69 : memref<1x8x128xbf16, #tpu.memory_space<vmem>> -> memref<8x128xbf16, #tpu.memory_space<vmem>>
      %71 = tpu.memref_slice %arg16[%5] : memref<2x!tpu.dma_semaphore, #tpu.memory_space<semaphore_mem>> -> memref<1x!tpu.dma_semaphore, #tpu.memory_space<semaphore_mem>>
      %72 = tpu.memref_squeeze %71 : memref<1x!tpu.dma_semaphore, #tpu.memory_space<semaphore_mem>> -> memref<!tpu.dma_semaphore, #tpu.memory_space<semaphore_mem>>
      tpu.enqueue_dma source(%68 : memref<8x128xbf16, #tpu.memory_space<any>>) target(%70 : memref<8x128xbf16, #tpu.memory_space<vmem>>) target_semaphore(%72 : memref<!tpu.dma_semaphore, #tpu.memory_space<semaphore_mem>>)
    } else {
    }
    return
  }
  func.func @transform_1(%arg0: i32, %arg1: i32, %arg2: i32) -> (i32, i32, i32) {
    %c0_i32 = arith.constant 0 : i32
    %c0_i32_0 = arith.constant 0 : i32
    %c0_i32_1 = arith.constant 0 : i32
    return %arg0, %c0_i32, %c0_i32_0 : i32, i32, i32
  }
  func.func @transform_2(%arg0: i32, %arg1: i32, %arg2: i32) -> (i32, i32, i32) {
    %c0_i32 = arith.constant 0 : i32
    %c0_i32_0 = arith.constant 0 : i32
    %c0_i32_1 = arith.constant 0 : i32
    return %arg0, %c0_i32, %c0_i32_0 : i32, i32, i32
  }
  func.func @transform_3(%arg0: i32, %arg1: i32, %arg2: i32) -> (i32, i32, i32) {
    %c0_i32 = arith.constant 0 : i32
    %c0_i32_0 = arith.constant 0 : i32
    %c0_i32_1 = arith.constant 0 : i32
    return %arg0, %c0_i32, %c0_i32_0 : i32, i32, i32
  }
  func.func @transform_4(%arg0: i32, %arg1: i32, %arg2: i32) -> (i32, i32) {
    %c0_i32 = arith.constant 0 : i32
    %c0_i32_0 = arith.constant 0 : i32
    %c0_i32_1 = arith.constant 0 : i32
    return %c0_i32, %c0_i32_0 : i32, i32
  }
  func.func @transform_5(%arg0: i32, %arg1: i32, %arg2: i32) -> (i32, i32) {
    %c0_i32 = arith.constant 0 : i32
    %c0_i32_0 = arith.constant 0 : i32
    %c0_i32_1 = arith.constant 0 : i32
    return %c0_i32, %c0_i32_0 : i32, i32
  }
}

</mosaic_0001>

<llo_original>
// kernel: mlp_forward.1
$region0: #{mlp_forward.1}
  #allocation0 [shape = 'u32[]', space=smem, size = 0x4, offset = 0x4, fixed_abs, tag = 'smem constant byte address 0x4 - core index']
  #allocation1 [shape = 'u32[72,128]{1,0:T(1,128)}', space=vmem, size = 0x9000, scoped, tag = 'internal scratch']
  #allocation2 [shape = 'bf16[2,8,128]{2,1,0:T(8,128)(2,1)}', space=vmem, size = 0x1000, scoped, tag = 'scratch operand']
  #allocation3 [shape = 'bf16[8,128]{1,0:T(8,128)(2,1)}', space=vmem, size = 0x800, scoped, tag = 'scratch operand']
  #allocation4 [shape = 'f32[8,128]{1,0:T(8,128)}', space=vmem, size = 0x1000, scoped, tag = 'scratch operand']
  #allocation5 [shape = 'f32[2,128]{1,0:T(2,128)}', space=vmem, size = 0x400, scoped, tag = 'scratch operand']
  #allocation6 [shape = 'f32[4,128]{1,0:T(4,128)}', space=vmem, size = 0x800, scoped, tag = 'scratch operand']
  #allocation7 [shape = 's32[2]{0}', space=sflag, size = 0x8, scoped, tag = 'scratch operand']
  #allocation8 [shape = 's32[1]{0}', space=sflag, size = 0x4, scoped, tag = 'scratch operand']
  #allocation13 [shape = 's32[]', space=sflag, size = 0x4, offset = 0, fixed_abs, tag = 'sflag constant byte address 0x0 - dummy sync flag']
  #allocation14 [shape = 's32[]', space=sflag, size = 0x4, offset = 0, fixed_abs, tag = 'sflag constant byte address 0x0 - dummy sync flag']
  #allocation15 [shape = 's32[]', space=sflag, size = 0x4, offset = 0, fixed_abs, tag = 'sflag constant byte address 0x0 - dummy sync flag']
  #allocation16 [shape = 's32[]', space=sflag, size = 0x4, offset = 0, fixed_abs, tag = 'sflag constant byte address 0x0 - dummy sync flag']
  #allocation17 [shape = 's32[]', space=sflag, size = 0x4, offset = 0, fixed_abs, tag = 'sflag constant byte address 0x0 - dummy sync flag']
  %s0 = inlined_call_operand.vmem [shape: bf16[24,128], index: 0, kind: input, shape index: {}, may-alias: {0,6}]
  %s1 = inlined_call_operand.hbm [shape: bf16[2,128,128], index: 1, kind: input, shape index: {}]
  %s2 = inlined_call_operand.hbm [shape: bf16[2,128,128], index: 2, kind: input, shape index: {}]
  %s3 = inlined_call_operand.vmem [shape: f32[2,4,128], index: 3, kind: input, shape index: {}]
  %s4 = inlined_call_operand.vmem [shape: bf16[128,128], index: 4, kind: input, shape index: {}]
  %s5 = inlined_call_operand.vmem [shape: f32[1,128], index: 5, kind: input, shape index: {}]
  %s6 = inlined_call_operand.vmem [shape: bf16[24,128], index: 6, kind: output, shape index: {0}, may-alias: {0,6}]
  %s7 = inlined_call_operand.vmem [shape: f32[24,128], index: 7, kind: output, shape index: {1}]
  %8 = xla_tuple %s6, %s7
  %s9 = sld [smem:[#allocation0]]
  $region247: #{mlp_forward.1} parent=0
    _
  %s11 = ssub.s32 1, %s9
  %s12 = scalar_select 0, %s11, %s9
  $region1: #{mlp_forward.1} parent=0
    #allocation9 [shape = 'u8[65536]{0}', space=vmem, size = 0x10000, scoped, tag = 'input window, operand 1']
    #allocation10 [shape = 's32[2]{0}', space=sflag, size = 0x8, scoped, tag = 'scoped memory for mlp_forward.1']
    #allocation11 [shape = 'u8[65536]{0}', space=vmem, size = 0x10000, scoped, tag = 'input window, operand 2']
    #allocation12 [shape = 's32[2]{0}', space=sflag, size = 0x8, scoped, tag = 'scoped memory for mlp_forward.1']
    %13 = vsyncpa [#allocation10], 0
    %s14 = scalar_lea.sflag [#allocation10], 1
    %15 = vsyncpa %s14, 0
    %16 = vsyncpa [#allocation12], 0
    %s17 = scalar_lea.sflag [#allocation12], 1
    %18 = vsyncpa %s17, 0
    loop: start=0, step=1, limit=19
    $region2: #{mlp_forward.1} parent=1 // loop_pre_header
      _
    $region3: #{mlp_forward.1} parent=1 // loop_header
      %s20 = sphi 0, %s24
      %p21 = scmp.ge.s32.totalorder %s20, 19
      %s26 = sphi 0, %s42
      %s27 = sphi 0, %s38
      %s28 = sphi 0, %s34
      %s29 = sphi 0, %s26
      %s30 = sphi 0, %s27
      %s31 = sphi 0, %s28
      %s45 = sphi 0, %s47
      %s48 = sphi 0, %s45
      %s58 = sphi 0, %s48
      %s64 = sphi 0, %s66
      %s67 = sphi 0, %s64
      %s77 = sphi 0, %s67
      %s83 = sphi 0, %s85
      %s86 = sphi 0, %s83
      %s96 = sphi 0, %s86
      %s100 = sphi 0, %s100
      %s102 = sphi 0, %s100
      %s110 = sphi 0, %s102
      %s114 = sphi 0, %s114
      %s116 = sphi 0, %s114
      %s124 = sphi 0, %s116
    $region4: #{mlp_forward.1} parent=1 // loop_header_branch
      %23 = sbr.rel (%p21) target = $region8
    $region5: #{mlp_forward.1} parent=1 // loop_body
      %s25 = ssub.s32 %s20, 1
      %s32 = sadd.s32 1, %s28
      %p33 = scmp.ge.s32.totalorder %s32, 3
      %s34 = scalar_select %p33, 0, %s32
      %s35 = sadd.s32 1, %s27
      %s36 = scalar_select %p33, %s35, %s27
      %p37 = scmp.ge.s32.totalorder %s36, 3
      %s38 = scalar_select %p37, 0, %s36
      %s39 = sadd.s32 1, %s26
      %s40 = scalar_select %p37, %s39, %s26
      %p41 = scmp.ge.s32.totalorder %s40, 2
      %s42 = scalar_select %p41, 0, %s40
      %s43 = ssub.s32 %s26, %s42
      %p44 = scmp.eq.s32.totalorder %s43, 0
      %s46 = sadd.s32 %s45, 1
      %s47 = scalar_select %p44, %s45, %s46
      %p49 = pneg %p44
      %p50 = scmp.eq.s32.totalorder %s20, 17
      %p51 = por %p49, %p50
      %p52 = scmp.ne.s32.totalorder %s45, %s48
      %p53 = scmp.eq.s32.totalorder %s20, 0
      %p54 = por %p52, %p53
      %p55 = scmp.ne.s32.totalorder %s45, %s48
      %p56 = scmp.eq.s32.totalorder %s25, 17
      %p57 = por %p55, %p56
      %p59 = scmp.ne.s32.totalorder %s48, %s58
      %p60 = scmp.eq.s32.totalorder %s25, 0
      %p61 = por %p59, %p60
      %s62 = ssub.s32 %s26, %s42
      %p63 = scmp.eq.s32.totalorder %s62, 0
      %s65 = sadd.s32 %s64, 1
      %s66 = scalar_select %p63, %s64, %s65
      %p68 = pneg %p63
      %p69 = scmp.eq.s32.totalorder %s20, 17
      %p70 = por %p68, %p69
      %p71 = scmp.ne.s32.totalorder %s64, %s67
      %p72 = scmp.eq.s32.totalorder %s20, 0
      %p73 = por %p71, %p72
      %p74 = scmp.ne.s32.totalorder %s64, %s67
      %p75 = scmp.eq.s32.totalorder %s25, 17
      %p76 = por %p74, %p75
      %p78 = scmp.ne.s32.totalorder %s67, %s77
      %p79 = scmp.eq.s32.totalorder %s25, 0
      %p80 = por %p78, %p79
      %s81 = ssub.s32 %s26, %s42
      %p82 = scmp.eq.s32.totalorder %s81, 0
      %s84 = sadd.s32 %s83, 1
      %s85 = scalar_select %p82, %s83, %s84
      %p87 = pneg %p82
      %p88 = scmp.eq.s32.totalorder %s20, 17
      %p89 = por %p87, %p88
      %p90 = scmp.ne.s32.totalorder %s83, %s86
      %p91 = scmp.eq.s32.totalorder %s20, 0
      %p92 = por %p90, %p91
      %p93 = scmp.ne.s32.totalorder %s83, %s86
      %p94 = scmp.eq.s32.totalorder %s25, 17
      %p95 = por %p93, %p94
      %p97 = scmp.ne.s32.totalorder %s86, %s96
      %p98 = scmp.eq.s32.totalorder %s25, 0
      %p99 = por %p97, %p98
      %s101 = sadd.s32 %s100, 1
      %p103 = scmp.eq.s32.totalorder %s20, 17
      %p104 = scmp.ne.s32.totalorder %s100, %s102
      %p105 = scmp.eq.s32.totalorder %s20, 0
      %p106 = por %p104, %p105
      %p107 = scmp.ne.s32.totalorder %s100, %s102
      %p108 = scmp.eq.s32.totalorder %s25, 17
      %p109 = por %p107, %p108
      %p111 = scmp.ne.s32.totalorder %s102, %s110
      %p112 = scmp.eq.s32.totalorder %s25, 0
      %p113 = por %p111, %p112
      %s115 = sadd.s32 %s114, 1
      %p117 = scmp.eq.s32.totalorder %s20, 17
      %p118 = scmp.ne.s32.totalorder %s114, %s116
      %p119 = scmp.eq.s32.totalorder %s20, 0
      %p120 = por %p118, %p119
      %p121 = scmp.ne.s32.totalorder %s114, %s116
      %p122 = scmp.eq.s32.totalorder %s25, 17
      %p123 = por %p121, %p122
      %p125 = scmp.ne.s32.totalorder %s116, %s124
      %p126 = scmp.eq.s32.totalorder %s25, 0
      %p127 = por %p125, %p126
      %p128 = scmp.le.s32.totalorder 1, %s20
      // Predicated region
      $region9: #{mlp_forward.1} parent=5 // pred_check
        %p129 = pneg %p128
      $region10: #{mlp_forward.1} parent=5 // pred_check_branch
        %131 = sbr.rel (%p129) target = $region12
      $region11: #{mlp_forward.1} parent=5 // pred_region
        %s132 = ssub.s32 %s20, 1
        // Predicated region
        $region13: #{mlp_forward.1} parent=11 // pred_check
          %p133 = pneg %p113
        $region14: #{mlp_forward.1} parent=11 // pred_check_branch
          %135 = sbr.rel (%p133) target = $region16
        $region15: #{mlp_forward.1} parent=11 // pred_region
          _
        $region16: #{mlp_forward.1} parent=11 // pred_fallthru
          _
        // Predicated region
        $region17: #{mlp_forward.1} parent=11 // pred_check
          %p136 = pneg %p127
        $region18: #{mlp_forward.1} parent=11 // pred_check_branch
          %138 = sbr.rel (%p136) target = $region20
        $region19: #{mlp_forward.1} parent=11 // pred_region
          _
        $region20: #{mlp_forward.1} parent=11 // pred_fallthru
          _
      $region12: #{mlp_forward.1} parent=5 // pred_fallthru
        _
      %p139 = scmp.lt.s32.totalorder %s20, 18
      // Predicated region
      $region21: #{mlp_forward.1} parent=5 // pred_check
        %p140 = pneg %p139
      $region22: #{mlp_forward.1} parent=5 // pred_check_branch
        %142 = sbr.rel (%p140) target = $region24
      $region23: #{mlp_forward.1} parent=5 // pred_region
        // Predicated region
        $region25: #{mlp_forward.1} parent=23 // pred_check
          %p143 = pneg %p54
        $region26: #{mlp_forward.1} parent=23 // pred_check_branch
          %145 = sbr.rel (%p143) target = $region28
        $region27: #{mlp_forward.1} parent=23 // pred_region
          %s146 = sand.u32 %s45, 1
          %s147 = scalar_lea.sflag [#allocation10], %s146
          %s148 = sand.u32 %s45, 1
          %s149 = smul.addr %s148, 64
          %s150 = scalar_lea.vmem [#allocation9], %s149
          %152 = vsyncadd %s147, 0
          %s153 = smul.addr %s26, 16
          %s154 = smul.addr %s153, 4
          %s155 = scalar_lea.hbm %s1, %s154
          %s156 = sshll.u32 %s155, 4
          %s157 = int_to_ptr.hbm [resolvable:$true] %s156
          %s158 = sshll.u32 %s150, 4
          %s159 = int_to_ptr.vmem [resolvable:$true] %s158
          %164 = dma.hbm_to_vmem [thread:$0]  %s157, 1024, %s159, %s147, 64, 64, 4
        $region28: #{mlp_forward.1} parent=23 // pred_fallthru
          _
        // Predicated region
        $region29: #{mlp_forward.1} parent=23 // pred_check
          %p165 = pneg %p73
        $region30: #{mlp_forward.1} parent=23 // pred_check_branch
          %167 = sbr.rel (%p165) target = $region32
        $region31: #{mlp_forward.1} parent=23 // pred_region
          %s168 = sand.u32 %s64, 1
          %s169 = scalar_lea.sflag [#allocation12], %s168
          %s170 = sand.u32 %s64, 1
          %s171 = smul.addr %s170, 64
          %s172 = scalar_lea.vmem [#allocation11], %s171
          %174 = vsyncadd %s169, 0
          %s175 = smul.addr %s26, 16
          %s176 = smul.addr %s175, 4
          %s177 = scalar_lea.hbm %s2, %s176
          %s178 = sshll.u32 %s177, 4
          %s179 = int_to_ptr.hbm [resolvable:$true] %s178
          %s180 = sshll.u32 %s172, 4
          %s181 = int_to_ptr.vmem [resolvable:$true] %s180
          %186 = dma.hbm_to_vmem [thread:$0]  %s179, 1024, %s181, %s169, 64, 64, 4
        $region32: #{mlp_forward.1} parent=23 // pred_fallthru
          _
        // Predicated region
        $region33: #{mlp_forward.1} parent=23 // pred_check
          %p187 = pneg %p92
        $region34: #{mlp_forward.1} parent=23 // pred_check_branch
          %189 = sbr.rel (%p187) target = $region36
        $region35: #{mlp_forward.1} parent=23 // pred_region
          %p190 = scmp.lt.s32.totalorder %s26, 1
          %s191 = scalar_select %p190, %s26, 1
          %s192 = smul.addr %s191, 4
          %s193 = scalar_lea.vmem %s3, %s192
        $region36: #{mlp_forward.1} parent=23 // pred_fallthru
          _
      $region24: #{mlp_forward.1} parent=5 // pred_fallthru
        _
      %p194 = scmp.le.s32.totalorder 1, %s20
      // Predicated region
      $region37: #{mlp_forward.1} parent=5 // pred_check
        %p195 = pneg %p194
      $region38: #{mlp_forward.1} parent=5 // pred_check_branch
        %197 = sbr.rel (%p195) target = $region40
      $region39: #{mlp_forward.1} parent=5 // pred_region
        %s198 = ssub.s32 %s20, 1
        %s199 = sand.u32 %s48, 1
        %s200 = scalar_lea.sflag [#allocation10], %s199
        %s201 = sand.u32 %s48, 1
        %s202 = smul.addr %s201, 64
        %s203 = scalar_lea.vmem [#allocation9], %s202
        // Predicated region
        $region41: #{mlp_forward.1} parent=39 // pred_check
          %p204 = pneg %p61
        $region42: #{mlp_forward.1} parent=39 // pred_check_branch
          %206 = sbr.rel (%p204) target = $region44
        $region43: #{mlp_forward.1} parent=39 // pred_region
          %208 = dma.done %s200, 1024
        $region44: #{mlp_forward.1} parent=39 // pred_fallthru
          _
        %s209 = sand.u32 %s67, 1
        %s210 = scalar_lea.sflag [#allocation12], %s209
        %s211 = sand.u32 %s67, 1
        %s212 = smul.addr %s211, 64
        %s213 = scalar_lea.vmem [#allocation11], %s212
        // Predicated region
        $region45: #{mlp_forward.1} parent=39 // pred_check
          %p214 = pneg %p80
        $region46: #{mlp_forward.1} parent=39 // pred_check_branch
          %216 = sbr.rel (%p214) target = $region48
        $region47: #{mlp_forward.1} parent=39 // pred_region
          %218 = dma.done %s210, 1024
        $region48: #{mlp_forward.1} parent=39 // pred_fallthru
          _
        %s219 = sand.u32 %s48, 1
        %s220 = scalar_lea.sflag [#allocation10], %s219
        %s221 = sand.u32 %s48, 1
        %s222 = smul.addr %s221, 64
        %s223 = scalar_lea.vmem [#allocation9], %s222
        %p224 = pneg %p61
        %p225 = pneg %p57
        %s226 = sand.u32 %s67, 1
        %s227 = scalar_lea.sflag [#allocation12], %s226
        %s228 = sand.u32 %s67, 1
        %s229 = smul.addr %s228, 64
        %s230 = scalar_lea.vmem [#allocation11], %s229
        %p231 = pneg %p80
        %p232 = pneg %p76
        %p233 = scmp.lt.s32.totalorder %s29, 1
        %s234 = scalar_select %p233, %s29, 1
        %s235 = smul.addr %s234, 4
        %s236 = scalar_lea.vmem %s3, %s235
        %p237 = pneg %p99
        %p238 = pneg %p95
        %p239 = pneg %p113
        %p240 = pneg %p109
        %p241 = pneg %p127
        %p242 = pneg %p123
        %p243 = scmp.lt.s32.totalorder %s29, 1
        %s244 = scalar_select %p243, %s29, 1
        %s245 = smul.addr %s244, 4
        %s246 = scalar_lea.vmem %s3, %s245
        %s247 = smul.u32 %s29, 3
        %s248 = sadd.s32 %s247, %s30
        %s249 = smul.u32 %s248, 3
        %s250 = sadd.s32 %s249, %s31
        %p251 = scmp.lt.s32.totalorder %s250, 0
        %s252 = ssub.s32 0, %s250
        %s253 = scalar_select %p251, %s252, %s250
        %s254 = sand.u32 %s253, 1
        %s255 = ssub.s32 0, %s254
        %s256 = scalar_select %p251, %s255, %s254
        %s257 = ssub.s32 1, %s256
        %s258 = smul.u32 %s31, 8
        %s259 = sadd.s32 %s31, 1
        %p260 = scmp.lt.s32.totalorder %s259, 0
        %s261 = ssub.s32 0, %s259
        %s262 = scalar_select %p260, %s261, %s259
        %s263 = sdiv.u32.pop %s262, 3
        %s264 = srem.u32.pop %s262, 3
        %s265 = ssub.s32 0, %s264
        %s266 = scalar_select %p260, %s265, %s264
        %s267 = smul.u32 %s266, 8
        %p268 = scmp.eq.s32.totalorder %s29, 0
        %p269 = scmp.eq.s32.totalorder %s30, 0
        %p270 = pnand %p268, %p269
        %p271 = pneg %p270
        %p272 = scmp.eq.s32.totalorder %s31, 0
        %p273 = pnand %p271, %p272
        %p274 = pneg %p273
        %p275 = scmp.eq.s32.totalorder %s29, 1
        %p276 = scmp.eq.s32.totalorder %s30, 2
        %p277 = pnand %p275, %p276
        %p278 = pneg %p277
        %p279 = scmp.eq.s32.totalorder %s31, 2
        %p280 = pnand %p278, %p279
        %p281 = pneg %p280
        // Predicated region
        $region49: #{mlp_forward.1} parent=39 // pred_check
          _
        $region50: #{mlp_forward.1} parent=39 // pred_check_branch
          %283 = sbr.rel (%p273) target = $region52
        $region51: #{mlp_forward.1} parent=39 // pred_region
          %s284 = sshra.s32 %s258, 3
          %s285 = sand.u32 %s258, 7
          %s286 = smul.addr %s284, 4
          %s287 = scalar_lea.vmem %s6, %s286
          %s288 = smul.addr %s256, 4
          %s289 = scalar_lea.vmem [#allocation2], %s288
          %s290 = scalar_lea.sflag [#allocation7], %s256
          // Predicated region
          $region53: #{mlp_forward.1} parent=51 // pred_check
            _
          $region54: #{mlp_forward.1} parent=51 // pred_check_branch
            %292 = sbr.rel target = $region56
          $region55: #{mlp_forward.1} parent=51 // pred_region
            // Predicated region
            $region68: #{mlp_forward.1} parent=55 // pred_check
              _
            $region69: #{mlp_forward.1} parent=55 // pred_check_branch
              %308 = sbr.rel (0) target = $region71
            $region70: #{mlp_forward.1} parent=55 // pred_region
              %s310 = ssub.s32 16, 1
              loop: start=0, step=1, limit=1
              $region72: #{mlp_forward.1} parent=70 // loop_pre_header
                _
              $region73: #{mlp_forward.1} parent=70 // loop_header
                %s312 = sphi 0, %s316
                %p313 = scmp.ge.s32.totalorder %s312, 1
                %s317 = sphi %s287, %s287
                %s318 = sphi %s289, %s289
              $region74: #{mlp_forward.1} parent=70 // loop_header_branch
                %315 = sbr.rel (%p313) target = $region78
              $region75: #{mlp_forward.1} parent=70 // loop_body
                %v319 = vld [vmem:[%s317] sm:%s310]
                %320 = vst [vmem:[%s318] sm:%s310] %v319
              $region76: #{mlp_forward.1} parent=70 // loop_footer
                %s316 = sadd.s32 1, %s312
              $region77: #{mlp_forward.1} parent=70 // loop_footer_branch
                %311 = sbr.rel target = $region73
              $region78: #{mlp_forward.1} parent=70 // loop_exit
                _
            $region71: #{mlp_forward.1} parent=55 // pred_fallthru
              _
          $region56: #{mlp_forward.1} parent=51 // pred_fallthru
            _
          // Predicated region
          $region57: #{mlp_forward.1} parent=51 // pred_check
            _
          $region58: #{mlp_forward.1} parent=51 // pred_check_branch
            %294 = sbr.rel (0) target = $region60
          $region59: #{mlp_forward.1} parent=51 // pred_region
            %s296 = ssub.s32 16, 1
            loop: start=0, step=1, limit=1
            $region61: #{mlp_forward.1} parent=59 // loop_pre_header
              _
            $region62: #{mlp_forward.1} parent=59 // loop_header
              %s298 = sphi 0, %s302
              %p299 = scmp.ge.s32.totalorder %s298, 1
              %s303 = sphi %s287, %s287
              %s304 = sphi %s289, %s289
            $region63: #{mlp_forward.1} parent=59 // loop_header_branch
              %301 = sbr.rel (%p299) target = $region67
            $region64: #{mlp_forward.1} parent=59 // loop_body
              %v305 = vld [vmem:[%s303] sm:%s296]
              %306 = vst [vmem:[%s304] sm:%s296] %v305
            $region65: #{mlp_forward.1} parent=59 // loop_footer
              %s302 = sadd.s32 1, %s298
            $region66: #{mlp_forward.1} parent=59 // loop_footer_branch
              %297 = sbr.rel target = $region62
            $region67: #{mlp_forward.1} parent=59 // loop_exit
              _
          $region60: #{mlp_forward.1} parent=51 // pred_fallthru
            _
          // Predicated region
          $region79: #{mlp_forward.1} parent=51 // pred_check
            _
          $region80: #{mlp_forward.1} parent=51 // pred_check_branch
            %323 = sbr.rel (0) target = $region82
          $region81: #{mlp_forward.1} parent=51 // pred_region
            %324 = vsyncadd %s290, 64
          $region82: #{mlp_forward.1} parent=51 // pred_fallthru
            _
        $region52: #{mlp_forward.1} parent=39 // pred_fallthru
          _
        %s325 = sshra.s32 %s258, 3
        %s326 = sand.u32 %s258, 7
        %s327 = smul.addr %s325, 4
        %s328 = scalar_lea.vmem %s6, %s327
        %s329 = smul.addr %s256, 4
        %s330 = scalar_lea.vmem [#allocation2], %s329
        %s331 = scalar_lea.sflag [#allocation7], %s256
        %s332 = smul.u32 4, 1
        %s333 = smul.u32 %s332, 1
        %s334 = sshll.u32 %s333, 4
        %335 = dma.done %s331, %s334
        %p336 = scmp.lt.s32.totalorder %s30, 2
        // Predicated region
        $region83: #{mlp_forward.1} parent=39 // pred_check
          %p337 = pneg %p336
        $region84: #{mlp_forward.1} parent=39 // pred_check_branch
          %339 = sbr.rel (%p337) target = $region86
        $region85: #{mlp_forward.1} parent=39 // pred_region
          %s340 = sshra.s32 %s267, 3
          %s341 = sand.u32 %s267, 7
          %s342 = smul.addr %s340, 4
          %s343 = scalar_lea.vmem %s6, %s342
          %s344 = smul.addr %s257, 4
          %s345 = scalar_lea.vmem [#allocation2], %s344
          %s346 = scalar_lea.sflag [#allocation7], %s257
          // Predicated region
          $region87: #{mlp_forward.1} parent=85 // pred_check
            _
          $region88: #{mlp_forward.1} parent=85 // pred_check_branch
            %348 = sbr.rel target = $region90
          $region89: #{mlp_forward.1} parent=85 // pred_region
            // Predicated region
            $region102: #{mlp_forward.1} parent=89 // pred_check
              _
            $region103: #{mlp_forward.1} parent=89 // pred_check_branch
              %364 = sbr.rel (0) target = $region105
            $region104: #{mlp_forward.1} parent=89 // pred_region
              %s366 = ssub.s32 16, 1
              loop: start=0, step=1, limit=1
              $region106: #{mlp_forward.1} parent=104 // loop_pre_header
                _
              $region107: #{mlp_forward.1} parent=104 // loop_header
                %s368 = sphi 0, %s372
                %p369 = scmp.ge.s32.totalorder %s368, 1
                %s373 = sphi %s343, %s343
                %s374 = sphi %s345, %s345
              $region108: #{mlp_forward.1} parent=104 // loop_header_branch
                %371 = sbr.rel (%p369) target = $region112
              $region109: #{mlp_forward.1} parent=104 // loop_body
                %v375 = vld [vmem:[%s373] sm:%s366]
                %376 = vst [vmem:[%s374] sm:%s366] %v375
              $region110: #{mlp_forward.1} parent=104 // loop_footer
                %s372 = sadd.s32 1, %s368
              $region111: #{mlp_forward.1} parent=104 // loop_footer_branch
                %367 = sbr.rel target = $region107
              $region112: #{mlp_forward.1} parent=104 // loop_exit
                _
            $region105: #{mlp_forward.1} parent=89 // pred_fallthru
              _
          $region90: #{mlp_forward.1} parent=85 // pred_fallthru
            _
          // Predicated region
          $region91: #{mlp_forward.1} parent=85 // pred_check
            _
          $region92: #{mlp_forward.1} parent=85 // pred_check_branch
            %350 = sbr.rel (0) target = $region94
          $region93: #{mlp_forward.1} parent=85 // pred_region
            %s352 = ssub.s32 16, 1
            loop: start=0, step=1, limit=1
            $region95: #{mlp_forward.1} parent=93 // loop_pre_header
              _
            $region96: #{mlp_forward.1} parent=93 // loop_header
              %s354 = sphi 0, %s358
              %p355 = scmp.ge.s32.totalorder %s354, 1
              %s359 = sphi %s343, %s343
              %s360 = sphi %s345, %s345
            $region97: #{mlp_forward.1} parent=93 // loop_header_branch
              %357 = sbr.rel (%p355) target = $region101
            $region98: #{mlp_forward.1} parent=93 // loop_body
              %v361 = vld [vmem:[%s359] sm:%s352]
              %362 = vst [vmem:[%s360] sm:%s352] %v361
            $region99: #{mlp_forward.1} parent=93 // loop_footer
              %s358 = sadd.s32 1, %s354
            $region100: #{mlp_forward.1} parent=93 // loop_footer_branch
              %353 = sbr.rel target = $region96
            $region101: #{mlp_forward.1} parent=93 // loop_exit
              _
          $region94: #{mlp_forward.1} parent=85 // pred_fallthru
            _
          // Predicated region
          $region113: #{mlp_forward.1} parent=85 // pred_check
            _
          $region114: #{mlp_forward.1} parent=85 // pred_check_branch
            %379 = sbr.rel (0) target = $region116
          $region115: #{mlp_forward.1} parent=85 // pred_region
            %380 = vsyncadd %s346, 64
          $region116: #{mlp_forward.1} parent=85 // pred_fallthru
            _
        $region86: #{mlp_forward.1} parent=39 // pred_fallthru
          _
        %v381 = vld [vmem:[%s330] sm:$0xf]
        %v382 = vld [vmem:[%s203] sm:$0xf]
        %v383 = vld [vmem:[%s203 + $0x4] sm:$0xf]
        %v384 = vld [vmem:[%s203 + $0x8] sm:$0xf]
        %v385 = vld [vmem:[%s203 + $0xc] sm:$0xf]
        %v386 = vld [vmem:[%s203 + $0x10] sm:$0xf]
        %v387 = vld [vmem:[%s203 + $0x14] sm:$0xf]
        %v388 = vld [vmem:[%s203 + $0x18] sm:$0xf]
        %v389 = vld [vmem:[%s203 + $0x1c] sm:$0xf]
        %v390 = vld [vmem:[%s203 + $0x20] sm:$0xf]
        %v391 = vld [vmem:[%s203 + $0x24] sm:$0xf]
        %v392 = vld [vmem:[%s203 + $0x28] sm:$0xf]
        %v393 = vld [vmem:[%s203 + $0x2c] sm:$0xf]
        %v394 = vld [vmem:[%s203 + $0x30] sm:$0xf]
        %v395 = vld [vmem:[%s203 + $0x34] sm:$0xf]
        %v396 = vld [vmem:[%s203 + $0x38] sm:$0xf]
        %v397 = vld [vmem:[%s203 + $0x3c] sm:$0xf]
        %v398 = vld [vmem:[%s213] sm:$0xf]
        %v399 = vld [vmem:[%s213 + $0x4] sm:$0xf]
        %v400 = vld [vmem:[%s213 + $0x8] sm:$0xf]
        %v401 = vld [vmem:[%s213 + $0xc] sm:$0xf]
        %v402 = vld [vmem:[%s213 + $0x10] sm:$0xf]
        %v403 = vld [vmem:[%s213 + $0x14] sm:$0xf]
        %v404 = vld [vmem:[%s213 + $0x18] sm:$0xf]
        %v405 = vld [vmem:[%s213 + $0x1c] sm:$0xf]
        %v406 = vld [vmem:[%s213 + $0x20] sm:$0xf]
        %v407 = vld [vmem:[%s213 + $0x24] sm:$0xf]
        %v408 = vld [vmem:[%s213 + $0x28] sm:$0xf]
        %v409 = vld [vmem:[%s213 + $0x2c] sm:$0xf]
        %v410 = vld [vmem:[%s213 + $0x30] sm:$0xf]
        %v411 = vld [vmem:[%s213 + $0x34] sm:$0xf]
        %v412 = vld [vmem:[%s213 + $0x38] sm:$0xf]
        %v413 = vld [vmem:[%s213 + $0x3c] sm:$0xf]
        %p414 = pnand %p269, %p272
        %p415 = pneg %p414
        // Predicated region
        $region117: #{mlp_forward.1} parent=39 // pred_check
          _
        $region118: #{mlp_forward.1} parent=39 // pred_check_branch
          %417 = sbr.rel (%p414) target = $region120
        $region119: #{mlp_forward.1} parent=39 // pred_region
          %418 = vst [vmem:[#allocation5] sm:$0x3] 0.0
        $region120: #{mlp_forward.1} parent=39 // pred_fallthru
          _
        %p419 = scmp.eq.s32.totalorder %s30, 1
        %p420 = pnand %p419, %p272
        %p421 = pneg %p420
        // Predicated region
        $region121: #{mlp_forward.1} parent=39 // pred_check
          _
        $region122: #{mlp_forward.1} parent=39 // pred_check_branch
          %423 = sbr.rel (%p420) target = $region124
        $region123: #{mlp_forward.1} parent=39 // pred_region
          %v424 = vld [vmem:[%s246] sm:$0x1]
          %v425 = vld [vmem:[%s246 + $0x1] sm:$0x1]
          %v426 = vld [vmem:[#allocation5] sm:$0x1]
          %v427 = vmul.f32 %v426, 0.055555556
          %v428 = vld [vmem:[#allocation5 + $0x1] sm:$0x1]
          %v429 = vmul.f32 %v428, 0.055555556
          %v430 = vmul.f32 %v427, %v427
          %v431 = vsub.f32 %v429, %v430
          %v432 = vmax.f32 %v431, 0.0
          %v433 = vadd.f32 %v432, 1e-05
          %v434 = vrsqrt.pop %v433
          %v435 = vmul.f32 %v434, %v433
          %v436 = vmul.f32 %v435, %v434
          %v437 = vmul.f32 0.5, %v436
          %v438 = vsub.f32 1.5, %v437
          %v439 = vmul.f32 %v434, %v438
          %vm440 = vweird.f32 %v433
          %vm441 = vweird.f32 %v434
          %vm442 = vmor %vm440, %vm441
          %v443 = vsel %vm442, %v434, %v439
          %v444 = vmul.f32 %v424, %v443
          %445 = vst [vmem:[#allocation6] sm:$0x1] %v444
          %v446 = vmul.f32 %v427, %v444
          %v447 = vsub.f32 %v425, %v446
          %448 = vst [vmem:[#allocation6 + $0x1] sm:$0x1] %v447
          %449 = vst [vmem:[#allocation5] sm:$0x3] 0.0
        $region124: #{mlp_forward.1} parent=39 // pred_fallthru
          _
        %p450 = pnand %p276, %p272
        %p451 = pneg %p450
        // Predicated region
        $region125: #{mlp_forward.1} parent=39 // pred_check
          _
        $region126: #{mlp_forward.1} parent=39 // pred_check_branch
          %453 = sbr.rel (%p450) target = $region128
        $region127: #{mlp_forward.1} parent=39 // pred_region
          %v454 = vld [vmem:[%s246 + $0x2] sm:$0x1]
          %v455 = vld [vmem:[%s246 + $0x3] sm:$0x1]
          %v456 = vld [vmem:[#allocation5] sm:$0x1]
          %v457 = vmul.f32 %v456, 0.055555556
          %v458 = vld [vmem:[#allocation5 + $0x1] sm:$0x1]
          %v459 = vmul.f32 %v458, 0.055555556
          %v460 = vmul.f32 %v457, %v457
          %v461 = vsub.f32 %v459, %v460
          %v462 = vmax.f32 %v461, 0.0
          %v463 = vadd.f32 %v462, 1e-05
          %v464 = vrsqrt.pop %v463
          %v465 = vmul.f32 %v464, %v463
          %v466 = vmul.f32 %v465, %v464
          %v467 = vmul.f32 0.5, %v466
          %v468 = vsub.f32 1.5, %v467
          %v469 = vmul.f32 %v464, %v468
          %vm470 = vweird.f32 %v463
          %vm471 = vweird.f32 %v464
          %vm472 = vmor %vm470, %vm471
          %v473 = vsel %vm472, %v464, %v469
          %v474 = vmul.f32 %v454, %v473
          %475 = vst [vmem:[#allocation6 + $0x2] sm:$0x1] %v474
          %v476 = vmul.f32 %v457, %v474
          %v477 = vsub.f32 %v455, %v476
          %478 = vst [vmem:[#allocation6 + $0x3] sm:$0x1] %v477
        $region128: #{mlp_forward.1} parent=39 // pred_fallthru
          _
        // Predicated region
        $region129: #{mlp_forward.1} parent=39 // pred_check
          %p479 = pneg %p269
        $region130: #{mlp_forward.1} parent=39 // pred_check_branch
          %481 = sbr.rel (%p479) target = $region132
        $region131: #{mlp_forward.1} parent=39 // pred_region
          %v498 = vunpack.c.l.b16 %v382
          %v499 = vunpack.c.l.b16 %v383
          %v500 = vunpack.c.l.b16 %v384
          %v501 = vunpack.c.l.b16 %v385
          %v502 = vunpack.c.l.b16 %v386
          %v503 = vunpack.c.l.b16 %v387
          %v504 = vunpack.c.l.b16 %v388
          %v505 = vunpack.c.l.b16 %v389
          %v506 = vunpack.c.l.b16 %v390
          %v507 = vunpack.c.l.b16 %v391
          %v508 = vunpack.c.l.b16 %v392
          %v509 = vunpack.c.l.b16 %v393
          %v510 = vunpack.c.l.b16 %v394
          %v511 = vunpack.c.l.b16 %v395
          %v512 = vunpack.c.l.b16 %v396
          %v513 = vunpack.c.l.b16 %v397
          %v514 = vpack.c.b16 %v499, %v498
          %v515 = vpack.c.b16 %v501, %v500
          %v516 = vpack.c.b16 %v503, %v502
          %v517 = vpack.c.b16 %v505, %v504
          %v518 = vpack.c.b16 %v507, %v506
          %v519 = vpack.c.b16 %v509, %v508
          %v520 = vpack.c.b16 %v511, %v510
          %v521 = vpack.c.b16 %v513, %v512
          %530 = vmatpush.bf16.msra.mxu0 %v521
          %531 = vmatpush.bf16.msra.mxu0 %v520
          %532 = vmatpush.bf16.msra.mxu0 %v519
          %533 = vmatpush.bf16.msra.mxu0 %v518
          %534 = vmatpush.bf16.msra.mxu0 %v517
          %535 = vmatpush.bf16.msra.mxu0 %v516
          %536 = vmatpush.bf16.msra.mxu0 %v515
          %537 = vmatpush.bf16.msra.mxu0 %v514
          %538 = vmatmul.bf16.gmra.mxu0 %v381
          %v539 = vpop.f32.mrf.mxu0
          %v540 = vadd.f32 0.0, %v539
          %v541 = vpop.f32.mrf.mxu0
          %542 = vdwg.mxu0
          %v543 = vlaneseq
          %v544 = vshrl.u32 %v543, 7
          %v545 = vstv %s258
          %v546 = vadd.s32 %v545, %v544
          %vm547 = vcmp.lt.s32.totalorder %v546, 18
          %v548 = vsel %vm547, 1, 0
          %v549 = vcvt.s32.f32 %v548
          %v550 = vmul.f32 %v540, %v549
          %v551 = vld [vmem:[#allocation5] sm:$0x1]
          %v552 = vrot.slane %v550, 4
          %v553 = vadd.f32 %v550, %v552
          %v554 = vrot.slane %v553, 2
          %v555 = vadd.f32 %v553, %v554
          %v556 = vrot.slane %v555, 1
          %v557 = vadd.f32 %v555, %v556
          %v558 = vadd.f32 %v551, %v557
          %559 = vst [vmem:[#allocation5] sm:$0x1] %v558
          %v560 = vld [vmem:[#allocation5 + $0x1] sm:$0x1]
          %v561 = vmul.f32 %v550, %v540
          %v562 = vrot.slane %v561, 4
          %v563 = vadd.f32 %v561, %v562
          %v564 = vrot.slane %v563, 2
          %v565 = vadd.f32 %v563, %v564
          %v566 = vrot.slane %v565, 1
          %v567 = vadd.f32 %v565, %v566
          %v568 = vadd.f32 %v560, %v567
          %569 = vst [vmem:[#allocation5 + $0x1] sm:$0x1] %v568
        $region132: #{mlp_forward.1} parent=39 // pred_fallthru
          _
        // Predicated region
        $region133: #{mlp_forward.1} parent=39 // pred_check
          %p570 = pneg %p419
        $region134: #{mlp_forward.1} parent=39 // pred_check_branch
          %572 = sbr.rel (%p570) target = $region136
        $region135: #{mlp_forward.1} parent=39 // pred_region
          %v589 = vunpack.c.l.b16 %v382
          %v590 = vunpack.c.l.b16 %v383
          %v591 = vunpack.c.l.b16 %v384
          %v592 = vunpack.c.l.b16 %v385
          %v593 = vunpack.c.l.b16 %v386
          %v594 = vunpack.c.l.b16 %v387
          %v595 = vunpack.c.l.b16 %v388
          %v596 = vunpack.c.l.b16 %v389
          %v597 = vunpack.c.l.b16 %v390
          %v598 = vunpack.c.l.b16 %v391
          %v599 = vunpack.c.l.b16 %v392
          %v600 = vunpack.c.l.b16 %v393
          %v601 = vunpack.c.l.b16 %v394
          %v602 = vunpack.c.l.b16 %v395
          %v603 = vunpack.c.l.b16 %v396
          %v604 = vunpack.c.l.b16 %v397
          %v605 = vpack.c.b16 %v590, %v589
          %v606 = vpack.c.b16 %v592, %v591
          %v607 = vpack.c.b16 %v594, %v593
          %v608 = vpack.c.b16 %v596, %v595
          %v609 = vpack.c.b16 %v598, %v597
          %v610 = vpack.c.b16 %v600, %v599
          %v611 = vpack.c.b16 %v602, %v601
          %v612 = vpack.c.b16 %v604, %v603
          %621 = vmatpush.bf16.msra.mxu0 %v612
          %622 = vmatpush.bf16.msra.mxu0 %v611
          %623 = vmatpush.bf16.msra.mxu0 %v610
          %624 = vmatpush.bf16.msra.mxu0 %v609
          %625 = vmatpush.bf16.msra.mxu0 %v608
          %626 = vmatpush.bf16.msra.mxu0 %v607
          %627 = vmatpush.bf16.msra.mxu0 %v606
          %628 = vmatpush.bf16.msra.mxu0 %v605
          %629 = vmatmul.bf16.gmra.mxu0 %v381
          %v630 = vpop.f32.mrf.mxu0
          %v631 = vadd.f32 0.0, %v630
          %v632 = vpop.f32.mrf.mxu0
          %633 = vdwg.mxu0
          %v634 = vld [vmem:[#allocation6] sm:$0x1]
          %v635 = vperm.slane %v634, 0
          %v636 = vmul.f32 %v631, %v635
          %v637 = vld [vmem:[#allocation6 + $0x1] sm:$0x1]
          %v638 = vperm.slane %v637, 0
          %v639 = vadd.f32 %v636, %v638
          %v640 = vmax.f32 %v639, 0.0
          %v641 = vpack.c.bf16 %v640, %v640
          %v658 = vunpack.c.l.b16 %v398
          %v659 = vunpack.c.l.b16 %v399
          %v660 = vunpack.c.l.b16 %v400
          %v661 = vunpack.c.l.b16 %v401
          %v662 = vunpack.c.l.b16 %v402
          %v663 = vunpack.c.l.b16 %v403
          %v664 = vunpack.c.l.b16 %v404
          %v665 = vunpack.c.l.b16 %v405
          %v666 = vunpack.c.l.b16 %v406
          %v667 = vunpack.c.l.b16 %v407
          %v668 = vunpack.c.l.b16 %v408
          %v669 = vunpack.c.l.b16 %v409
          %v670 = vunpack.c.l.b16 %v410
          %v671 = vunpack.c.l.b16 %v411
          %v672 = vunpack.c.l.b16 %v412
          %v673 = vunpack.c.l.b16 %v413
          %v674 = vpack.c.b16 %v659, %v658
          %v675 = vpack.c.b16 %v661, %v660
          %v676 = vpack.c.b16 %v663, %v662
          %v677 = vpack.c.b16 %v665, %v664
          %v678 = vpack.c.b16 %v667, %v666
          %v679 = vpack.c.b16 %v669, %v668
          %v680 = vpack.c.b16 %v671, %v670
          %v681 = vpack.c.b16 %v673, %v672
          %690 = vmatpush.bf16.msra.mxu0 %v681
          %691 = vmatpush.bf16.msra.mxu0 %v680
          %692 = vmatpush.bf16.msra.mxu0 %v679
          %693 = vmatpush.bf16.msra.mxu0 %v678
          %694 = vmatpush.bf16.msra.mxu0 %v677
          %695 = vmatpush.bf16.msra.mxu0 %v676
          %696 = vmatpush.bf16.msra.mxu0 %v675
          %697 = vmatpush.bf16.msra.mxu0 %v674
          %698 = vmatmul.bf16.gmra.mxu0 %v641
          %v699 = vpop.f32.mrf.mxu0
          %v700 = vadd.f32 0.0, %v699
          %v701 = vpop.f32.mrf.mxu0
          %702 = vdwg.mxu0
          %v703 = vlaneseq
          %v704 = vshrl.u32 %v703, 7
          %v705 = vstv %s258
          %v706 = vadd.s32 %v705, %v704
          %vm707 = vcmp.lt.s32.totalorder %v706, 18
          %v708 = vsel %vm707, 1, 0
          %v709 = vcvt.s32.f32 %v708
          %v710 = vmul.f32 %v700, %v709
          %v711 = vld [vmem:[#allocation5] sm:$0x1]
          %v712 = vrot.slane %v710, 4
          %v713 = vadd.f32 %v710, %v712
          %v714 = vrot.slane %v713, 2
          %v715 = vadd.f32 %v713, %v714
          %v716 = vrot.slane %v715, 1
          %v717 = vadd.f32 %v715, %v716
          %v718 = vadd.f32 %v711, %v717
          %719 = vst [vmem:[#allocation5] sm:$0x1] %v718
          %v720 = vld [vmem:[#allocation5 + $0x1] sm:$0x1]
          %v721 = vmul.f32 %v710, %v700
          %v722 = vrot.slane %v721, 4
          %v723 = vadd.f32 %v721, %v722
          %v724 = vrot.slane %v723, 2
          %v725 = vadd.f32 %v723, %v724
          %v726 = vrot.slane %v725, 1
          %v727 = vadd.f32 %v725, %v726
          %v728 = vadd.f32 %v720, %v727
          %729 = vst [vmem:[#allocation5 + $0x1] sm:$0x1] %v728
        $region136: #{mlp_forward.1} parent=39 // pred_fallthru
          _
        // Predicated region
        $region137: #{mlp_forward.1} parent=39 // pred_check
          %p730 = pneg %p276
        $region138: #{mlp_forward.1} parent=39 // pred_check_branch
          %732 = sbr.rel (%p730) target = $region140
        $region139: #{mlp_forward.1} parent=39 // pred_region
          %v749 = vunpack.c.l.b16 %v382
          %v750 = vunpack.c.l.b16 %v383
          %v751 = vunpack.c.l.b16 %v384
          %v752 = vunpack.c.l.b16 %v385
          %v753 = vunpack.c.l.b16 %v386
          %v754 = vunpack.c.l.b16 %v387
          %v755 = vunpack.c.l.b16 %v388
          %v756 = vunpack.c.l.b16 %v389
          %v757 = vunpack.c.l.b16 %v390
          %v758 = vunpack.c.l.b16 %v391
          %v759 = vunpack.c.l.b16 %v392
          %v760 = vunpack.c.l.b16 %v393
          %v761 = vunpack.c.l.b16 %v394
          %v762 = vunpack.c.l.b16 %v395
          %v763 = vunpack.c.l.b16 %v396
          %v764 = vunpack.c.l.b16 %v397
          %v765 = vpack.c.b16 %v750, %v749
          %v766 = vpack.c.b16 %v752, %v751
          %v767 = vpack.c.b16 %v754, %v753
          %v768 = vpack.c.b16 %v756, %v755
          %v769 = vpack.c.b16 %v758, %v757
          %v770 = vpack.c.b16 %v760, %v759
          %v771 = vpack.c.b16 %v762, %v761
          %v772 = vpack.c.b16 %v764, %v763
          %781 = vmatpush.bf16.msra.mxu0 %v772
          %782 = vmatpush.bf16.msra.mxu0 %v771
          %783 = vmatpush.bf16.msra.mxu0 %v770
          %784 = vmatpush.bf16.msra.mxu0 %v769
          %785 = vmatpush.bf16.msra.mxu0 %v768
          %786 = vmatpush.bf16.msra.mxu0 %v767
          %787 = vmatpush.bf16.msra.mxu0 %v766
          %788 = vmatpush.bf16.msra.mxu0 %v765
          %789 = vmatmul.bf16.gmra.mxu0 %v381
          %v790 = vpop.f32.mrf.mxu0
          %v791 = vadd.f32 0.0, %v790
          %v792 = vpop.f32.mrf.mxu0
          %793 = vdwg.mxu0
          %v794 = vld [vmem:[#allocation6] sm:$0x1]
          %v795 = vperm.slane %v794, 0
          %v796 = vmul.f32 %v791, %v795
          %v797 = vld [vmem:[#allocation6 + $0x1] sm:$0x1]
          %v798 = vperm.slane %v797, 0
          %v799 = vadd.f32 %v796, %v798
          %v800 = vmax.f32 %v799, 0.0
          %v801 = vpack.c.bf16 %v800, %v800
          %v818 = vunpack.c.l.b16 %v398
          %v819 = vunpack.c.l.b16 %v399
          %v820 = vunpack.c.l.b16 %v400
          %v821 = vunpack.c.l.b16 %v401
          %v822 = vunpack.c.l.b16 %v402
          %v823 = vunpack.c.l.b16 %v403
          %v824 = vunpack.c.l.b16 %v404
          %v825 = vunpack.c.l.b16 %v405
          %v826 = vunpack.c.l.b16 %v406
          %v827 = vunpack.c.l.b16 %v407
          %v828 = vunpack.c.l.b16 %v408
          %v829 = vunpack.c.l.b16 %v409
          %v830 = vunpack.c.l.b16 %v410
          %v831 = vunpack.c.l.b16 %v411
          %v832 = vunpack.c.l.b16 %v412
          %v833 = vunpack.c.l.b16 %v413
          %v834 = vpack.c.b16 %v819, %v818
          %v835 = vpack.c.b16 %v821, %v820
          %v836 = vpack.c.b16 %v823, %v822
          %v837 = vpack.c.b16 %v825, %v824
          %v838 = vpack.c.b16 %v827, %v826
          %v839 = vpack.c.b16 %v829, %v828
          %v840 = vpack.c.b16 %v831, %v830
          %v841 = vpack.c.b16 %v833, %v832
          %850 = vmatpush.bf16.msra.mxu0 %v841
          %851 = vmatpush.bf16.msra.mxu0 %v840
          %852 = vmatpush.bf16.msra.mxu0 %v839
          %853 = vmatpush.bf16.msra.mxu0 %v838
          %854 = vmatpush.bf16.msra.mxu0 %v837
          %855 = vmatpush.bf16.msra.mxu0 %v836
          %856 = vmatpush.bf16.msra.mxu0 %v835
          %857 = vmatpush.bf16.msra.mxu0 %v834
          %858 = vmatmul.bf16.gmra.mxu0 %v801
          %v859 = vpop.f32.mrf.mxu0
          %v860 = vadd.f32 0.0, %v859
          %v861 = vpop.f32.mrf.mxu0
          %862 = vdwg.mxu0
          %v863 = vunpack.c.l.bf16 %v381
          %v864 = vld [vmem:[#allocation6 + $0x2] sm:$0x1]
          %v865 = vperm.slane %v864, 0
          %v866 = vmul.f32 %v860, %v865
          %v867 = vld [vmem:[#allocation6 + $0x3] sm:$0x1]
          %v868 = vperm.slane %v867, 0
          %v869 = vadd.f32 %v866, %v868
          %v870 = vadd.f32 %v869, %v863
          %v871 = vmax.f32 %v870, 0.0
          %p872 = scmp.lt.s32.totalorder %s29, 1
          // Predicated region
          $region141: #{mlp_forward.1} parent=139 // pred_check
            %p873 = pneg %p872
          $region142: #{mlp_forward.1} parent=139 // pred_check_branch
            %875 = sbr.rel (%p873) target = $region144
          $region143: #{mlp_forward.1} parent=139 // pred_region
            %v876 = vpack.c.bf16 %v871, %v871
            %877 = vst [vmem:[#allocation3] sm:$0xf] %v876
            // Predicated region
            $region145: #{mlp_forward.1} parent=143 // pred_check
              _
            $region146: #{mlp_forward.1} parent=143 // pred_check_branch
              %879 = sbr.rel target = $region148
            $region147: #{mlp_forward.1} parent=143 // pred_region
              // Predicated region
              $region160: #{mlp_forward.1} parent=147 // pred_check
                _
              $region161: #{mlp_forward.1} parent=147 // pred_check_branch
                %895 = sbr.rel (0) target = $region163
              $region162: #{mlp_forward.1} parent=147 // pred_region
                %s897 = ssub.s32 16, 1
                loop: start=0, step=1, limit=1
                $region164: #{mlp_forward.1} parent=162 // loop_pre_header
                  _
                $region165: #{mlp_forward.1} parent=162 // loop_header
                  %s899 = sphi 0, %s903
                  %p900 = scmp.ge.s32.totalorder %s899, 1
                  %s904 = sphi [#allocation3], [#allocation3]
                  %s905 = sphi %s328, %s328
                $region166: #{mlp_forward.1} parent=162 // loop_header_branch
                  %902 = sbr.rel (%p900) target = $region170
                $region167: #{mlp_forward.1} parent=162 // loop_body
                  %v906 = vld [vmem:[%s904] sm:%s897]
                  %907 = vst [vmem:[%s905] sm:%s897] %v906
                $region168: #{mlp_forward.1} parent=162 // loop_footer
                  %s903 = sadd.s32 1, %s899
                $region169: #{mlp_forward.1} parent=162 // loop_footer_branch
                  %898 = sbr.rel target = $region165
                $region170: #{mlp_forward.1} parent=162 // loop_exit
                  _
              $region163: #{mlp_forward.1} parent=147 // pred_fallthru
                _
            $region148: #{mlp_forward.1} parent=143 // pred_fallthru
              _
            // Predicated region
            $region149: #{mlp_forward.1} parent=143 // pred_check
              _
            $region150: #{mlp_forward.1} parent=143 // pred_check_branch
              %881 = sbr.rel (0) target = $region152
            $region151: #{mlp_forward.1} parent=143 // pred_region
              %s883 = ssub.s32 16, 1
              loop: start=0, step=1, limit=1
              $region153: #{mlp_forward.1} parent=151 // loop_pre_header
                _
              $region154: #{mlp_forward.1} parent=151 // loop_header
                %s885 = sphi 0, %s889
                %p886 = scmp.ge.s32.totalorder %s885, 1
                %s890 = sphi [#allocation3], [#allocation3]
                %s891 = sphi %s328, %s328
              $region155: #{mlp_forward.1} parent=151 // loop_header_branch
                %888 = sbr.rel (%p886) target = $region159
              $region156: #{mlp_forward.1} parent=151 // loop_body
                %v892 = vld [vmem:[%s890] sm:%s883]
                %893 = vst [vmem:[%s891] sm:%s883] %v892
              $region157: #{mlp_forward.1} parent=151 // loop_footer
                %s889 = sadd.s32 1, %s885
              $region158: #{mlp_forward.1} parent=151 // loop_footer_branch
                %884 = sbr.rel target = $region154
              $region159: #{mlp_forward.1} parent=151 // loop_exit
                _
            $region152: #{mlp_forward.1} parent=143 // pred_fallthru
              _
            // Predicated region
            $region171: #{mlp_forward.1} parent=143 // pred_check
              _
            $region172: #{mlp_forward.1} parent=143 // pred_check_branch
              %910 = sbr.rel (0) target = $region174
            $region173: #{mlp_forward.1} parent=143 // pred_region
              %911 = vsyncadd [#allocation8], 64
            $region174: #{mlp_forward.1} parent=143 // pred_fallthru
              _
            %s912 = sshll.u32 %s333, 4
            %913 = dma.done [#allocation8], %s912
          $region144: #{mlp_forward.1} parent=139 // pred_fallthru
            _
          // Predicated region
          $region175: #{mlp_forward.1} parent=139 // pred_check
            %p914 = pneg %p275
          $region176: #{mlp_forward.1} parent=139 // pred_check_branch
            %916 = sbr.rel (%p914) target = $region178
          $region177: #{mlp_forward.1} parent=139 // pred_region
            %v917 = vpack.c.bf16 %v871, %v871
            %v918 = vld [vmem:[%s4] sm:$0xf]
            %v919 = vld [vmem:[%s4 + $0x4] sm:$0xf]
            %v920 = vld [vmem:[%s4 + $0x8] sm:$0xf]
            %v921 = vld [vmem:[%s4 + $0xc] sm:$0xf]
            %v922 = vld [vmem:[%s4 + $0x10] sm:$0xf]
            %v923 = vld [vmem:[%s4 + $0x14] sm:$0xf]
            %v924 = vld [vmem:[%s4 + $0x18] sm:$0xf]
            %v925 = vld [vmem:[%s4 + $0x1c] sm:$0xf]
            %v926 = vld [vmem:[%s4 + $0x20] sm:$0xf]
            %v927 = vld [vmem:[%s4 + $0x24] sm:$0xf]
            %v928 = vld [vmem:[%s4 + $0x28] sm:$0xf]
            %v929 = vld [vmem:[%s4 + $0x2c] sm:$0xf]
            %v930 = vld [vmem:[%s4 + $0x30] sm:$0xf]
            %v931 = vld [vmem:[%s4 + $0x34] sm:$0xf]
            %v932 = vld [vmem:[%s4 + $0x38] sm:$0xf]
            %v933 = vld [vmem:[%s4 + $0x3c] sm:$0xf]
            %v934 = vld [vmem:[%s5] sm:$0x1]
            %v936 = vperm.slane %v934, 0
            %v954 = vunpack.c.l.b16 %v918
            %v955 = vunpack.c.l.b16 %v919
            %v956 = vunpack.c.l.b16 %v920
            %v957 = vunpack.c.l.b16 %v921
            %v958 = vunpack.c.l.b16 %v922
            %v959 = vunpack.c.l.b16 %v923
            %v960 = vunpack.c.l.b16 %v924
            %v961 = vunpack.c.l.b16 %v925
            %v962 = vunpack.c.l.b16 %v926
            %v963 = vunpack.c.l.b16 %v927
            %v964 = vunpack.c.l.b16 %v928
            %v965 = vunpack.c.l.b16 %v929
            %v966 = vunpack.c.l.b16 %v930
            %v967 = vunpack.c.l.b16 %v931
            %v968 = vunpack.c.l.b16 %v932
            %v969 = vunpack.c.l.b16 %v933
            %v970 = vpack.c.b16 %v955, %v954
            %v971 = vpack.c.b16 %v957, %v956
            %v972 = vpack.c.b16 %v959, %v958
            %v973 = vpack.c.b16 %v961, %v960
            %v974 = vpack.c.b16 %v963, %v962
            %v975 = vpack.c.b16 %v965, %v964
            %v976 = vpack.c.b16 %v967, %v966
            %v977 = vpack.c.b16 %v969, %v968
            %986 = vmatpush.bf16.msra.mxu0 %v977
            %987 = vmatpush.bf16.msra.mxu0 %v976
            %988 = vmatpush.bf16.msra.mxu0 %v975
            %989 = vmatpush.bf16.msra.mxu0 %v974
            %990 = vmatpush.bf16.msra.mxu0 %v973
            %991 = vmatpush.bf16.msra.mxu0 %v972
            %992 = vmatpush.bf16.msra.mxu0 %v971
            %993 = vmatpush.bf16.msra.mxu0 %v970
            %994 = vmatmul.bf16.gmra.mxu0 %v917
            %v995 = vpop.f32.mrf.mxu0
            %v996 = vadd.f32 %v936, %v995
            %v997 = vpop.f32.mrf.mxu0
            %998 = vdwg.mxu0
            %999 = vst [vmem:[#allocation4] sm:$0xff] %v996
            %s1000 = scalar_lea.vmem %s7, %s258
            // Predicated region
            $region179: #{mlp_forward.1} parent=177 // pred_check
              _
            $region180: #{mlp_forward.1} parent=177 // pred_check_branch
              %1002 = sbr.rel (0) target = $region182
            $region181: #{mlp_forward.1} parent=177 // pred_region
              // Predicated region
              $region194: #{mlp_forward.1} parent=181 // pred_check
                _
              $region195: #{mlp_forward.1} parent=181 // pred_check_branch
                %1018 = sbr.rel (0) target = $region197
              $region196: #{mlp_forward.1} parent=181 // pred_region
                loop: start=0, step=1, limit=1
                $region198: #{mlp_forward.1} parent=196 // loop_pre_header
                  _
                $region199: #{mlp_forward.1} parent=196 // loop_header
                  %s1020 = sphi 0, %s1024
                  %p1021 = scmp.ge.s32.totalorder %s1020, 1
                  %s1025 = sphi [#allocation4], [#allocation4]
                  %s1026 = sphi %s1000, %s1000
                $region200: #{mlp_forward.1} parent=196 // loop_header_branch
                  %1023 = sbr.rel (%p1021) target = $region204
                $region201: #{mlp_forward.1} parent=196 // loop_body
                  %v1027 = vld [vmem:[%s1025] sm:$0xff]
                  %1028 = vst [vmem:[%s1026] sm:$0xff] %v1027
                $region202: #{mlp_forward.1} parent=196 // loop_footer
                  %s1024 = sadd.s32 1, %s1020
                $region203: #{mlp_forward.1} parent=196 // loop_footer_branch
                  %1019 = sbr.rel target = $region199
                $region204: #{mlp_forward.1} parent=196 // loop_exit
                  _
              $region197: #{mlp_forward.1} parent=181 // pred_fallthru
                _
              // Predicated region
              $region205: #{mlp_forward.1} parent=181 // pred_check
                _
              $region206: #{mlp_forward.1} parent=181 // pred_check_branch
                %1030 = sbr.rel target = $region208
              $region207: #{mlp_forward.1} parent=181 // pred_region
                _
              $region208: #{mlp_forward.1} parent=181 // pred_fallthru
                _
            $region182: #{mlp_forward.1} parent=177 // pred_fallthru
              _
            // Predicated region
            $region183: #{mlp_forward.1} parent=177 // pred_check
              _
            $region184: #{mlp_forward.1} parent=177 // pred_check_branch
              %1004 = sbr.rel target = $region186
            $region185: #{mlp_forward.1} parent=177 // pred_region
              %s1006 = ssub.s32 256, 1
              loop: start=0, step=1, limit=1
              $region187: #{mlp_forward.1} parent=185 // loop_pre_header
                _
              $region188: #{mlp_forward.1} parent=185 // loop_header
                %s1008 = sphi 0, %s1012
                %p1009 = scmp.ge.s32.totalorder %s1008, 1
                %s1013 = sphi [#allocation4], [#allocation4]
                %s1014 = sphi %s1000, %s1000
              $region189: #{mlp_forward.1} parent=185 // loop_header_branch
                %1011 = sbr.rel (%p1009) target = $region193
              $region190: #{mlp_forward.1} parent=185 // loop_body
                %v1015 = vld [vmem:[%s1013] sm:%s1006]
                %1016 = vst [vmem:[%s1014] sm:%s1006] %v1015
              $region191: #{mlp_forward.1} parent=185 // loop_footer
                %s1012 = sadd.s32 1, %s1008
              $region192: #{mlp_forward.1} parent=185 // loop_footer_branch
                %1007 = sbr.rel target = $region188
              $region193: #{mlp_forward.1} parent=185 // loop_exit
                _
            $region186: #{mlp_forward.1} parent=177 // pred_fallthru
              _
            // Predicated region
            $region209: #{mlp_forward.1} parent=177 // pred_check
              _
            $region210: #{mlp_forward.1} parent=177 // pred_check_branch
              %1033 = sbr.rel (0) target = $region212
            $region211: #{mlp_forward.1} parent=177 // pred_region
              %1034 = vsyncadd [#allocation8], 128
            $region212: #{mlp_forward.1} parent=177 // pred_fallthru
              _
            %s1035 = smul.u32 8, 1
            %s1036 = sshll.u32 %s1035, 4
            %1037 = dma.done [#allocation8], %s1036
          $region178: #{mlp_forward.1} parent=139 // pred_fallthru
            _
        $region140: #{mlp_forward.1} parent=39 // pred_fallthru
          _
        %p1038 = pneg %p281
        %p1039 = pnand %p276, %p1038
        %p1040 = pneg %p1039
        // Predicated region
        $region213: #{mlp_forward.1} parent=39 // pred_check
          _
        $region214: #{mlp_forward.1} parent=39 // pred_check_branch
          %1042 = sbr.rel (%p1039) target = $region216
        $region215: #{mlp_forward.1} parent=39 // pred_region
          %s1043 = sshra.s32 %s267, 3
          %s1044 = sand.u32 %s267, 7
          %s1045 = smul.addr %s1043, 4
          %s1046 = scalar_lea.vmem %s6, %s1045
          %s1047 = smul.addr %s257, 4
          %s1048 = scalar_lea.vmem [#allocation2], %s1047
          %s1049 = scalar_lea.sflag [#allocation7], %s257
          // Predicated region
          $region217: #{mlp_forward.1} parent=215 // pred_check
            _
          $region218: #{mlp_forward.1} parent=215 // pred_check_branch
            %1051 = sbr.rel target = $region220
          $region219: #{mlp_forward.1} parent=215 // pred_region
            // Predicated region
            $region232: #{mlp_forward.1} parent=219 // pred_check
              _
            $region233: #{mlp_forward.1} parent=219 // pred_check_branch
              %1067 = sbr.rel (0) target = $region235
            $region234: #{mlp_forward.1} parent=219 // pred_region
              %s1069 = ssub.s32 16, 1
              loop: start=0, step=1, limit=1
              $region236: #{mlp_forward.1} parent=234 // loop_pre_header
                _
              $region237: #{mlp_forward.1} parent=234 // loop_header
                %s1071 = sphi 0, %s1075
                %p1072 = scmp.ge.s32.totalorder %s1071, 1
                %s1076 = sphi %s1046, %s1046
                %s1077 = sphi %s1048, %s1048
              $region238: #{mlp_forward.1} parent=234 // loop_header_branch
                %1074 = sbr.rel (%p1072) target = $region242
              $region239: #{mlp_forward.1} parent=234 // loop_body
                %v1078 = vld [vmem:[%s1076] sm:%s1069]
                %1079 = vst [vmem:[%s1077] sm:%s1069] %v1078
              $region240: #{mlp_forward.1} parent=234 // loop_footer
                %s1075 = sadd.s32 1, %s1071
              $region241: #{mlp_forward.1} parent=234 // loop_footer_branch
                %1070 = sbr.rel target = $region237
              $region242: #{mlp_forward.1} parent=234 // loop_exit
                _
            $region235: #{mlp_forward.1} parent=219 // pred_fallthru
              _
          $region220: #{mlp_forward.1} parent=215 // pred_fallthru
            _
          // Predicated region
          $region221: #{mlp_forward.1} parent=215 // pred_check
            _
          $region222: #{mlp_forward.1} parent=215 // pred_check_branch
            %1053 = sbr.rel (0) target = $region224
          $region223: #{mlp_forward.1} parent=215 // pred_region
            %s1055 = ssub.s32 16, 1
            loop: start=0, step=1, limit=1
            $region225: #{mlp_forward.1} parent=223 // loop_pre_header
              _
            $region226: #{mlp_forward.1} parent=223 // loop_header
              %s1057 = sphi 0, %s1061
              %p1058 = scmp.ge.s32.totalorder %s1057, 1
              %s1062 = sphi %s1046, %s1046
              %s1063 = sphi %s1048, %s1048
            $region227: #{mlp_forward.1} parent=223 // loop_header_branch
              %1060 = sbr.rel (%p1058) target = $region231
            $region228: #{mlp_forward.1} parent=223 // loop_body
              %v1064 = vld [vmem:[%s1062] sm:%s1055]
              %1065 = vst [vmem:[%s1063] sm:%s1055] %v1064
            $region229: #{mlp_forward.1} parent=223 // loop_footer
              %s1061 = sadd.s32 1, %s1057
            $region230: #{mlp_forward.1} parent=223 // loop_footer_branch
              %1056 = sbr.rel target = $region226
            $region231: #{mlp_forward.1} parent=223 // loop_exit
              _
          $region224: #{mlp_forward.1} parent=215 // pred_fallthru
            _
          // Predicated region
          $region243: #{mlp_forward.1} parent=215 // pred_check
            _
          $region244: #{mlp_forward.1} parent=215 // pred_check_branch
            %1082 = sbr.rel (0) target = $region246
          $region245: #{mlp_forward.1} parent=215 // pred_region
            %1083 = vsyncadd %s1049, 64
          $region246: #{mlp_forward.1} parent=215 // pred_fallthru
            _
        $region216: #{mlp_forward.1} parent=39 // pred_fallthru
          _
      $region40: #{mlp_forward.1} parent=5 // pred_fallthru
        _
    $region6: #{mlp_forward.1} parent=1 // loop_footer
      %s24 = sadd.s32 1, %s20
    $region7: #{mlp_forward.1} parent=1 // loop_footer_branch
      %19 = sbr.rel target = $region3
    $region8: #{mlp_forward.1} parent=1 // loop_exit
      _
    %1084 = vsyncpa [#allocation10], 1
    %s1085 = scalar_lea.sflag [#allocation10], 1
    %1086 = vsyncpa %s1085, 1
    %1087 = vsyncpa [#allocation12], 1
    %s1088 = scalar_lea.sflag [#allocation12], 1
    %1089 = vsyncpa %s1088, 1
  %1090 = vsyncmov [#allocation7]
  %s1091 = vpop.sfrf %1090
  %p1092 = scmp.eq.s32.totalorder %s1091, 0
  %p1093 = pneg %p1092
  %1095 = shalt.err (%p1093)
  %s1096 = scalar_lea.sflag [#allocation7], 1
  %1097 = vsyncmov %s1096
  %s1098 = vpop.sfrf %1097
  %p1099 = scmp.eq.s32.totalorder %s1098, 0
  %p1100 = pneg %p1099
  %1102 = shalt.err (%p1100)
  %1103 = vsyncmov [#allocation8]
  %s1104 = vpop.sfrf %1103
  %p1105 = scmp.eq.s32.totalorder %s1104, 0
  %p1106 = pneg %p1105
  %1108 = shalt.err (%p1106)

</llo_original>
